<compile_context>
chip_gen: v7x
topology: tpu7x:2x2x1
jax: 0.10.0
libtpu: 0.0.40
codegen_flags: <defaults>
</compile_context>

<pallas_src>
import math

import jax
import jax.numpy as jnp
import numpy as np
from jax.experimental import pallas as pl
from jax.experimental.pallas import tpu as pltpu

EPS = 1e-5                       # PyTorch LayerNorm default eps
INV_SQRT2 = 1.0 / math.sqrt(2.0)


# ----------------------------------------------------------------------------
# Shared math helpers (used by both the Pallas kernel and the JAX reference)
# ----------------------------------------------------------------------------
def _layernorm(x, gamma, beta):
    mu = jnp.mean(x, axis=-1, keepdims=True)
    var = jnp.mean(jnp.square(x - mu), axis=-1, keepdims=True)
    return (x - mu) * jax.lax.rsqrt(var + EPS) * gamma + beta


def _gelu_exact(x):
    # torch.nn.GELU() default = exact (erf-based) GELU
    return 0.5 * x * (1.0 + jax.lax.erf(x * INV_SQRT2))


# ----------------------------------------------------------------------------
# Fused Pallas kernel: conv1 -> LN -> GELU -> conv2 -> LN -> GELU -> LN -> Linear
# for one batch block per grid step.  Everything is aligned, contiguous, f32.
#
# Data layout (per sample, stacked over the batch block along rows):
#   o0 row r = input times [8r .. 8r+7], each C_in lanes wide (8*C_in lanes)
#   o1 row r = o0 row r+1 (last row zero-padded, prepared wrapper-side)
# Conv1 output y1 (stride 2, kernel 3) is produced in 4 "phases" + 1 shifted
# phase (y1[4r], y1[4r+1], y1[4r+2], y1[4r+3], y1[4r+4]); conv2 outputs are
# produced split by time parity (y2[2r], y2[2r+1]); the projection places the
# pair side by side -> a dense 2*d_out (=128) wide store.
# ----------------------------------------------------------------------------
def _fused_pitch_kernel(o0_ref, o1_ref, w1_ref, w2_ref, p_ref, a_ref, bo_ref,
                        out_ref):
    c1 = w1_ref.shape[-1]
    c2 = w2_ref.shape[-1]

    def mm(a, b):
        return jnp.dot(a, b, preferred_element_type=jnp.float32)

    o0 = o0_ref[...]                       # (M, 8*C_in) f32
    o1 = o1_ref[...]

    b1, g1, be1 = p_ref[0:1, :c1], p_ref[1:2, :c1], p_ref[2:3, :c1]
    b2, g2, be2 = p_ref[3:4, :c2], p_ref[4:5, :c2], p_ref[5:6, :c2]

    def act1(z):                            # conv1 bias + LN + GELU
        return _gelu_exact(_layernorm(z + b1, g1, be1))

    def act2(z):                            # conv2 bias + LN + GELU
        return _gelu_exact(_layernorm(z + b2, g2, be2))

    # ---- conv1 phases (each matmul: contraction 8*C_in, aligned operands) ---
    p0 = act1(mm(o0, w1_ref[0]))            # y1[4r]
    p1 = act1(mm(o0, w1_ref[1]))            # y1[4r+1]
    p2 = act1(mm(o0, w1_ref[2]))            # y1[4r+2]
    p3 = act1(mm(o0, w1_ref[3]) + mm(o1, w1_ref[4]))   # y1[4r+3]
    p0n = act1(mm(o1, w1_ref[0]))           # y1[4r+4]

    # ---- conv2, split by output-time parity ---------------------------------
    w2_0, w2_1, w2_2 = w2_ref[0], w2_ref[1], w2_ref[2]
    ye = act2(mm(p0, w2_0) + mm(p1, w2_1) + mm(p2, w2_2))    # y2[2r]
    yo = act2(mm(p2, w2_0) + mm(p3, w2_1) + mm(p0n, w2_2))   # y2[2r+1]

    # ---- projection: non-affine LN (affine folded into a_ref / bo_ref) ------
    def ln_noaffine(x):
        mu = jnp.mean(x, axis=-1, keepdims=True)
        var = jnp.mean(jnp.square(x - mu), axis=-1, keepdims=True)
        return (x - mu) * jax.lax.rsqrt(var + EPS)

    # a_ref[0] = [gamma*W | 0], a_ref[1] = [0 | gamma*W]  -> dense 2*d_out rows
    out = mm(ln_noaffine(ye), a_ref[0]) + mm(ln_noaffine(yo), a_ref[1]) \
        + bo_ref[...]
    out_ref[...] = out.astype(out_ref.dtype)


# ----------------------------------------------------------------------------
# Module wrapper
# ----------------------------------------------------------------------------
class PitchEncoderPallas:
    """JAX/Pallas re-implementation of PitchEncoder.forward."""

    def __init__(self, feature_enc_layers, in_dim, output_dim=None,
                 extractor_mode="layer_norm", key=None):
        # TODO(synk): extractor_mode="default" (GroupNorm on first conv layer
        # only) is not implemented; only the "layer_norm" mode is supported.
        assert extractor_mode == "layer_norm"
        self.layers_spec = [tuple(l) for l in feature_enc_layers]
        # TODO(synk): kernel is specialised to two (C, 3, 2) conv layers (the
        # config used by emotion2vec_tonal); other specs are not supported.
        assert (len(self.layers_spec) == 2
                and all((k, s) == (3, 2) for (_, k, s) in self.layers_spec))
        self.in_dim = int(in_dim)
        self.c1 = self.layers_spec[0][0]
        self.c2 = self.layers_spec[1][0]
        self.cnn_dim = self.c2
        self.output_dim = output_dim
        self.has_linear = output_dim is not None and output_dim != self.c2
        self.d_out = output_dim if self.has_linear else self.c2

        key = jax.random.PRNGKey(0) if key is None else key
        ks = jax.random.split(key, 12)
        c_in, c1, c2 = self.in_dim, self.c1, self.c2
        w1 = jax.random.normal(ks[0], (c1, c_in, 3), jnp.float32) / math.sqrt(c_in * 3)
        b1 = jax.random.normal(ks[1], (c1,), jnp.float32) * 0.01
        g1 = 1.0 + 0.1 * jax.random.normal(ks[2], (c1,), jnp.float32)
        be1 = 0.05 * jax.random.normal(ks[3], (c1,), jnp.float32)
        w2 = jax.random.normal(ks[4], (c2, c1, 3), jnp.float32) / math.sqrt(c1 * 3)
        b2 = jax.random.normal(ks[5], (c2,), jnp.float32) * 0.01
        g2 = 1.0 + 0.1 * jax.random.normal(ks[6], (c2,), jnp.float32)
        be2 = 0.05 * jax.random.normal(ks[7], (c2,), jnp.float32)
        pg = 1.0 + 0.1 * jax.random.normal(ks[8], (c2,), jnp.float32)
        pb = 0.05 * jax.random.normal(ks[9], (c2,), jnp.float32)
        if self.has_linear:
            bound = 1.0 / math.sqrt(c2)
            lw = jax.random.uniform(ks[10], (c2, self.output_dim), jnp.float32,
                                    -bound, bound)
            lb = jax.random.uniform(ks[11], (self.output_dim,), jnp.float32,
                                    -bound, bound)
        else:
            lw, lb = None, None
        self._raw = dict(w1=w1, b1=b1, g1=g1, be1=be1, w2=w2, b2=b2, g2=g2,
                         be2=be2, pg=pg, pb=pb, lw=lw, lb=lb)
        self._pack_kernel_params()

    # ---- host-side weight re-packing ---------------------------------------
    def _pack_kernel_params(self):
        r = {k: (None if v is None else np.asarray(v)) for k, v in self._raw.items()}
        c_in, c1, c2, d_out = self.in_dim, self.c1, self.c2, self.d_out

        taps1 = [r["w1"][:, :, k].T for k in range(3)]          # (c_in, c1)
        w1p = np.zeros((5, 8 * c_in, c1), np.float32)

        def put(phase, off, tap):
            w1p[phase, off * c_in:(off + 1) * c_in, :] = tap

        for k in range(3):
            put(0, 0 + k, taps1[k])       # y1[4r]   <- times 8r+0..2   (o0)
            put(1, 2 + k, taps1[k])       # y1[4r+1] <- times 8r+2..4   (o0)
            put(2, 4 + k, taps1[k])       # y1[4r+2] <- times 8r+4..6   (o0)
        put(3, 6, taps1[0])               # y1[4r+3] <- times 8r+6,7    (o0)
        put(3, 7, taps1[1])
        put(4, 0, taps1[2])               # y1[4r+3] <- time 8r+8       (o1)

        w2p = np.stack([r["w2"][:, :, k].T for k in range(3)])  # (3, c1, c2)

        cmax = max(c1, c2)
        pv = np.zeros((6, cmax), np.float32)
        pv[0, :c1], pv[1, :c1], pv[2, :c1] = r["b1"], r["g1"], r["be1"]
        pv[3, :c2], pv[4, :c2], pv[5, :c2] = r["b2"], r["g2"], r["be2"]

        # Fold the projection LayerNorm affine into the Linear:
        #   (xn*g + b) @ W + c == xn @ (g[:,None]*W) + (b@W + c)
        if self.has_linear:
            ga = r["pg"][:, None] * r["lw"]
            base_b = r["pb"] @ r["lw"] + r["lb"]
        else:
            ga = np.diag(r["pg"]).astype(np.float32)
            base_b = r["pb"]
        a2 = np.zeros((2, c2, 2 * d_out), np.float32)
        a2[0, :, :d_out] = ga             # even-time half
        a2[1, :, d_out:] = ga             # odd-time half
        bo = np.tile(base_b, 2).reshape(1, 2 * d_out).astype(np.float32)

        self.w1p = jnp.asarray(w1p)
        self.w2p = jnp.asarray(w2p)
        self.pvec = jnp.asarray(pv)
        self.a2 = jnp.asarray(a2)
        self.bo = jnp.asarray(bo)

    # ---- length / mask arithmetic (plain JAX) -------------------------------
    def _conv_out_len(self, t):
        for (_, k, s) in self.layers_spec:
            t = (t - k) // s + 1
        return t

    def recalculate_lengths(self, input_lengths):
        out = input_lengths
        for (_, k, s) in self.layers_spec:
            out = (out - k) // s + 1
        return out

    def get_output_padding_mask(self, input_mask, out_len):
        # NOTE: out_len is the full conv output length; this equals
        # output_lengths.max() whenever at least one sample is unpadded
        # (static shape under jit; semantically conservative otherwise).
        if input_mask is None:
            return None
        input_lengths = (1 - input_mask.astype(jnp.int32)).sum(-1)
        output_lengths = self.recalculate_lengths(input_lengths)
        return jnp.arange(out_len)[None, :] >= output_lengths[:, None]

    # ---- pure-JAX reference (PyTorch-order math, f32, HIGHEST precision) ----
    def _reference_forward(self, x):
        r = self._raw
        hi = jax.lax.Precision.HIGHEST
        cur = x.astype(jnp.float32)
        for (w, b, g, be) in ((r["w1"], r["b1"], r["g1"], r["be1"]),
                              (r["w2"], r["b2"], r["g2"], r["be2"])):
            k, s = 3, 2
            t_out = (cur.shape[1] - k) // s + 1
            acc = None
            for kk in range(k):
                xk = cur[:, kk: kk + s * (t_out - 1) + 1: s, :]
                part = jnp.einsum("btc,cd->btd", xk, w[:, :, kk].T, precision=hi)
                acc = part if acc is None else acc + part
            cur = _gelu_exact(_layernorm(acc + b, g, be))
        mu = jnp.mean(cur, axis=-1, keepdims=True)
        var = jnp.mean(jnp.square(cur - mu), axis=-1, keepdims=True)
        hn = (cur - mu) * jax.lax.rsqrt(var + EPS) * r["pg"] + r["pb"]
        if self.has_linear:
            return jnp.einsum("btc,cd->btd", hn, r["lw"], precision=hi) + r["lb"]
        return hn

    # ---- grid sizing ---------------------------------------------------------
    @staticmethod
    def _pick_batch_block(batch, rows_per_sample):
        # Largest per-step batch block (<= 8) that divides B, keeps the grid
        # at >= 2 parallel steps (both v7x TensorCores busy), and keeps the
        # row block a multiple of 8 sublanes.
        for blk in range(min(batch, 8), 0, -1):
            if batch % blk:
                continue
            if (blk * rows_per_sample) % 8:
                continue
            if batch >= 2 and batch // blk < 2:
                continue
            return blk
        return batch                     # fall back: one full-extent step

    # ---- advisory cost estimate ---------------------------------------------
    def _cost(self, batch, rows):
        m = batch * rows
        c_in, c1, c2, d_out = self.in_dim, self.c1, self.c2, self.d_out
        flops = 2 * m * (6 * 8 * c_in * c1 + 6 * c1 * c2 + 2 * c2 * 2 * d_out)
        trans = m * (5 * c1 + 2 * c2)                     # erf
        bytes_acc = (2 * m * 8 * c_in + m * 2 * d_out) * 4
        for a in (self.w1p, self.w2p, self.pvec, self.a2, self.bo):
            bytes_acc += int(a.size) * 4
        return int(flops), int(trans), int(bytes_acc)

    # ---- fused pallas_call ---------------------------------------------------
    def _pallas_forward(self, x):
        B, T, c_in = x.shape
        assert c_in == self.in_dim
        t_out = self._conv_out_len(T)
        assert t_out >= 1, "input too short for the conv stack"
        d_out = self.d_out

        # Wrapper-side layout prep: pack 8 time steps per row + a shifted copy.
        # NOTE: padded input frames are NOT pre-zeroed (fairseq-style
        # extractors also don't); only the zero tail added here is new.
        t_pad = ((T + 7) // 8) * 8
        if t_pad != T:
            x = jnp.pad(x, ((0, 0), (0, t_pad - T), (0, 0)))
        rows = t_pad // 8
        o0 = x.astype(jnp.float32).reshape(B, rows, 8 * c_in)
        o1 = jnp.concatenate(
            [o0[:, 1:], jnp.zeros((B, 1, 8 * c_in), jnp.float32)], axis=1)
        o0 = o0.reshape(B * rows, 8 * c_in)
        o1 = o1.reshape(B * rows, 8 * c_in)

        b_blk = self._pick_batch_block(B, rows)
        m_blk = b_blk * rows
        grid = (B // b_blk,)

        def const_spec(arr):
            zeros = (0,) * arr.ndim
            return pl.BlockSpec(arr.shape, lambda i, z=zeros: z)

        in_specs = [
            pl.BlockSpec((m_blk, 8 * c_in), lambda i: (i, 0)),
            pl.BlockSpec((m_blk, 8 * c_in), lambda i: (i, 0)),
            const_spec(self.w1p),
            const_spec(self.w2p),
            const_spec(self.pvec),
            const_spec(self.a2),
            const_spec(self.bo),
        ]
        out_specs = pl.BlockSpec((m_blk, 2 * d_out), lambda i: (i, 0))
        out_shape = jax.ShapeDtypeStruct((B * rows, 2 * d_out), jnp.float32)

        flops, trans, bytes_acc = self._cost(B, rows)
        out = pl.pallas_call(
            _fused_pitch_kernel,
            grid=grid,
            in_specs=in_specs,
            out_specs=out_specs,
            out_shape=out_shape,
            compiler_params=pltpu.CompilerParams(
                dimension_semantics=("parallel",)),
            cost_estimate=pl.CostEstimate(
                flops=flops, transcendentals=trans, bytes_accessed=bytes_acc),
        )(o0, o1, self.w1p, self.w2p, self.pvec, self.a2, self.bo)

        # Un-pack the lane-dense time-pair layout and drop garbage tail rows.
        out = out.reshape(B, rows, 2, d_out).reshape(B, 2 * rows, d_out)
        return out[:, :t_out, :]

    # ---- forward -------------------------------------------------------------
    def __call__(self, pitch_features, padding_mask=None, target_length=None,
                 use_pallas=True):
        # pitch_features: (B, T, C_in); PyTorch transposes to NCT internally.
        assert pitch_features.ndim == 3
        if use_pallas:
            projected = self._pallas_forward(pitch_features)
        else:
            projected = self._reference_forward(pitch_features)

        t_out = projected.shape[1]
        if target_length is not None and t_out != target_length:
            # TODO(synk): F.interpolate(mode='linear', align_corners=False)
            # resize not implemented; demo uses target_length=None.
            raise NotImplementedError

        output_padding_mask = self.get_output_padding_mask(padding_mask, t_out)
        return projected, output_padding_mask


# ----------------------------------------------------------------------------
# Demo / self-test
# ----------------------------------------------------------------------------
if __name__ == "__main__":
    B, T, C_IN = 2, 64, 4
    feature_enc_layers = [(32, 3, 2), (32, 3, 2)]  # eval(cfg.feature_encoder_spec)
    OUTPUT_DIM = 64

    enc = PitchEncoderPallas(feature_enc_layers, in_dim=C_IN,
                             output_dim=OUTPUT_DIM,
                             extractor_mode="layer_norm")

    key = jax.random.PRNGKey(0)
    k_x, _ = jax.random.split(key)
    pitch_features = jax.random.normal(k_x, (B, T, C_IN), jnp.float32)
    # padding mask: sample 0 full-length, sample 1 has last 10 frames padded
    padding_mask = jnp.zeros((B, T), dtype=bool).at[1, T - 10:].set(True)

    out, out_mask = enc(pitch_features, padding_mask=padding_mask,
                        use_pallas=True)
    out = jax.block_until_ready(out)
    out_mask = jax.block_until_ready(out_mask)

    ref_out, ref_mask = enc(pitch_features, padding_mask=padding_mask,
                            use_pallas=False)
    # Both paths are float32; tolerance covers TPU matmul pass-count
    # differences between XLA and Mosaic (indexing bugs would be O(1)).
    np.testing.assert_allclose(np.asarray(out), np.asarray(ref_out),
                               rtol=2e-2, atol=2e-2)
    np.testing.assert_array_equal(np.asarray(out_mask), np.asarray(ref_mask))

    # expected conv output length: 64 -> 31 -> 15
    assert out.shape == (B, 15, OUTPUT_DIM), out.shape
    assert out_mask.shape == (B, 15), out_mask.shape

    print("KERNEL_OK")
</pallas_src>

<mosaic_0001>
module attributes {stable_mosaic.version = 11 : i64} {
  func.func @_fused_pitch_kernel(%arg0: i32, %arg1: memref<8x32xf32, #tpu.memory_space<vmem>>, %arg2: memref<8x32xf32, #tpu.memory_space<vmem>>, %arg3: memref<5x32x32xf32, #tpu.memory_space<vmem>>, %arg4: memref<3x32x32xf32, #tpu.memory_space<vmem>>, %arg5: memref<6x32xf32, #tpu.memory_space<vmem>>, %arg6: memref<2x32x128xf32, #tpu.memory_space<vmem>>, %arg7: memref<1x128xf32, #tpu.memory_space<vmem>>, %arg8: memref<8x128xf32, #tpu.memory_space<vmem>>) attributes {dimension_semantics = [#tpu.dimension_semantics<parallel>], iteration_bounds = array<i64: 2>, scalar_prefetch = 0 : i64, scratch_operands = 0 : i64, tpu.core_type = #tpu.core_type<tc>, window_params = [{transform_indices = @transform_0, window_bounds = array<i64: 8, 32>}, {transform_indices = @transform_1, window_bounds = array<i64: 8, 32>}, {pipeline_mode = #tpu.pipeline_mode<synchronous>, transform_indices = @transform_2, window_bounds = array<i64: 5, 32, 32>}, {pipeline_mode = #tpu.pipeline_mode<synchronous>, transform_indices = @transform_3, window_bounds = array<i64: 3, 32, 32>}, {pipeline_mode = #tpu.pipeline_mode<synchronous>, transform_indices = @transform_4, window_bounds = array<i64: 6, 32>}, {pipeline_mode = #tpu.pipeline_mode<synchronous>, transform_indices = @transform_5, window_bounds = array<i64: 2, 32, 128>}, {pipeline_mode = #tpu.pipeline_mode<synchronous>, transform_indices = @transform_6, window_bounds = array<i64: 1, 128>}, {transform_indices = @transform_7, window_bounds = array<i64: 8, 128>}]} {
    %c0 = arith.constant 0 : index
    %c0_0 = arith.constant 0 : index
    %0 = vector.load %arg1[%c0, %c0_0] : memref<8x32xf32, #tpu.memory_space<vmem>>, vector<8x32xf32>
    %c0_1 = arith.constant 0 : index
    %c0_2 = arith.constant 0 : index
    %1 = vector.load %arg2[%c0_1, %c0_2] : memref<8x32xf32, #tpu.memory_space<vmem>>, vector<8x32xf32>
    %c0_3 = arith.constant 0 : index
    %c0_4 = arith.constant 0 : index
    %2 = vector.load %arg5[%c0_3, %c0_4] : memref<6x32xf32, #tpu.memory_space<vmem>>, vector<1x32xf32>
    %c1 = arith.constant 1 : index
    %c0_5 = arith.constant 0 : index
    %3 = vector.load %arg5[%c1, %c0_5] : memref<6x32xf32, #tpu.memory_space<vmem>>, vector<1x32xf32>
    %c2 = arith.constant 2 : index
    %c0_6 = arith.constant 0 : index
    %4 = vector.load %arg5[%c2, %c0_6] : memref<6x32xf32, #tpu.memory_space<vmem>>, vector<1x32xf32>
    %c3 = arith.constant 3 : index
    %c0_7 = arith.constant 0 : index
    %5 = vector.load %arg5[%c3, %c0_7] : memref<6x32xf32, #tpu.memory_space<vmem>>, vector<1x32xf32>
    %c4 = arith.constant 4 : index
    %c0_8 = arith.constant 0 : index
    %6 = vector.load %arg5[%c4, %c0_8] : memref<6x32xf32, #tpu.memory_space<vmem>>, vector<1x32xf32>
    %c5 = arith.constant 5 : index
    %c0_9 = arith.constant 0 : index
    %7 = vector.load %arg5[%c5, %c0_9] : memref<6x32xf32, #tpu.memory_space<vmem>>, vector<1x32xf32>
    %c0_10 = arith.constant 0 : index
    %c0_11 = arith.constant 0 : index
    %c0_12 = arith.constant 0 : index
    %8 = vector.load %arg3[%c0_10, %c0_11, %c0_12] : memref<5x32x32xf32, #tpu.memory_space<vmem>>, vector<1x32x32xf32>
    %9 = vector.shape_cast %8 : vector<1x32x32xf32> to vector<32x32xf32>
    %cst = arith.constant dense<0.000000e+00> : vector<8x32xf32>
    %10 = tpu.matmul %0, %9, %cst {dimension_numbers = #tpu.dot_dimension_numbers<[1], [0], [0], [1], [0, 0, 1, 1], [], []>} : vector<8x32xf32>, vector<32x32xf32>, vector<8x32xf32> -> vector<8x32xf32>
    %11 = vector.broadcast %2 : vector<1x32xf32> to vector<8x32xf32>
    %12 = arith.addf %10, %11 : vector<8x32xf32>
    %cst_13 = arith.constant dense<0.000000e+00> : vector<8xf32>
    %13 = vector.multi_reduction <add>, %12, %cst_13 [1] : vector<8x32xf32> to vector<8xf32>
    %14 = vector.shape_cast %13 : vector<8xf32> to vector<8x1xf32>
    %cst_14 = arith.constant 3.200000e+01 : f32
    %15 = vector.broadcast %cst_14 : f32 to vector<8x1xf32>
    %16 = arith.divf %14, %15 : vector<8x1xf32>
    %17 = vector.broadcast %16 : vector<8x1xf32> to vector<8x32xf32>
    %18 = arith.subf %12, %17 : vector<8x32xf32>
    %19 = arith.mulf %18, %18 : vector<8x32xf32>
    %cst_15 = arith.constant dense<0.000000e+00> : vector<8xf32>
    %20 = vector.multi_reduction <add>, %19, %cst_15 [1] : vector<8x32xf32> to vector<8xf32>
    %21 = vector.shape_cast %20 : vector<8xf32> to vector<8x1xf32>
    %cst_16 = arith.constant 3.200000e+01 : f32
    %22 = vector.broadcast %cst_16 : f32 to vector<8x1xf32>
    %23 = arith.divf %21, %22 : vector<8x1xf32>
    %24 = vector.broadcast %16 : vector<8x1xf32> to vector<8x32xf32>
    %25 = arith.subf %12, %24 : vector<8x32xf32>
    %cst_17 = arith.constant 9.99999974E-6 : f32
    %26 = vector.broadcast %cst_17 : f32 to vector<8x1xf32>
    %27 = arith.addf %23, %26 : vector<8x1xf32>
    %28 = math.rsqrt %27 : vector<8x1xf32>
    %29 = vector.broadcast %28 : vector<8x1xf32> to vector<8x32xf32>
    %30 = arith.mulf %25, %29 : vector<8x32xf32>
    %31 = vector.broadcast %3 : vector<1x32xf32> to vector<8x32xf32>
    %32 = arith.mulf %30, %31 : vector<8x32xf32>
    %33 = vector.broadcast %4 : vector<1x32xf32> to vector<8x32xf32>
    %34 = arith.addf %32, %33 : vector<8x32xf32>
    %cst_18 = arith.constant 5.000000e-01 : f32
    %35 = vector.broadcast %cst_18 : f32 to vector<8x32xf32>
    %36 = arith.mulf %35, %34 : vector<8x32xf32>
    %cst_19 = arith.constant 0.707106769 : f32
    %37 = vector.broadcast %cst_19 : f32 to vector<8x32xf32>
    %38 = arith.mulf %34, %37 : vector<8x32xf32>
    %39 = math.erf %38 : vector<8x32xf32>
    %cst_20 = arith.constant 1.000000e+00 : f32
    %40 = vector.broadcast %cst_20 : f32 to vector<8x32xf32>
    %41 = arith.addf %40, %39 : vector<8x32xf32>
    %42 = arith.mulf %36, %41 : vector<8x32xf32>
    %c1_21 = arith.constant 1 : index
    %c0_22 = arith.constant 0 : index
    %c0_23 = arith.constant 0 : index
    %43 = vector.load %arg3[%c1_21, %c0_22, %c0_23] : memref<5x32x32xf32, #tpu.memory_space<vmem>>, vector<1x32x32xf32>
    %44 = vector.shape_cast %43 : vector<1x32x32xf32> to vector<32x32xf32>
    %cst_24 = arith.constant dense<0.000000e+00> : vector<8x32xf32>
    %45 = tpu.matmul %0, %44, %cst_24 {dimension_numbers = #tpu.dot_dimension_numbers<[1], [0], [0], [1], [0, 0, 1, 1], [], []>} : vector<8x32xf32>, vector<32x32xf32>, vector<8x32xf32> -> vector<8x32xf32>
    %46 = vector.broadcast %2 : vector<1x32xf32> to vector<8x32xf32>
    %47 = arith.addf %45, %46 : vector<8x32xf32>
    %cst_25 = arith.constant dense<0.000000e+00> : vector<8xf32>
    %48 = vector.multi_reduction <add>, %47, %cst_25 [1] : vector<8x32xf32> to vector<8xf32>
    %49 = vector.shape_cast %48 : vector<8xf32> to vector<8x1xf32>
    %cst_26 = arith.constant 3.200000e+01 : f32
    %50 = vector.broadcast %cst_26 : f32 to vector<8x1xf32>
    %51 = arith.divf %49, %50 : vector<8x1xf32>
    %52 = vector.broadcast %51 : vector<8x1xf32> to vector<8x32xf32>
    %53 = arith.subf %47, %52 : vector<8x32xf32>
    %54 = arith.mulf %53, %53 : vector<8x32xf32>
    %cst_27 = arith.constant dense<0.000000e+00> : vector<8xf32>
    %55 = vector.multi_reduction <add>, %54, %cst_27 [1] : vector<8x32xf32> to vector<8xf32>
    %56 = vector.shape_cast %55 : vector<8xf32> to vector<8x1xf32>
    %cst_28 = arith.constant 3.200000e+01 : f32
    %57 = vector.broadcast %cst_28 : f32 to vector<8x1xf32>
    %58 = arith.divf %56, %57 : vector<8x1xf32>
    %59 = vector.broadcast %51 : vector<8x1xf32> to vector<8x32xf32>
    %60 = arith.subf %47, %59 : vector<8x32xf32>
    %cst_29 = arith.constant 9.99999974E-6 : f32
    %61 = vector.broadcast %cst_29 : f32 to vector<8x1xf32>
    %62 = arith.addf %58, %61 : vector<8x1xf32>
    %63 = math.rsqrt %62 : vector<8x1xf32>
    %64 = vector.broadcast %63 : vector<8x1xf32> to vector<8x32xf32>
    %65 = arith.mulf %60, %64 : vector<8x32xf32>
    %66 = vector.broadcast %3 : vector<1x32xf32> to vector<8x32xf32>
    %67 = arith.mulf %65, %66 : vector<8x32xf32>
    %68 = vector.broadcast %4 : vector<1x32xf32> to vector<8x32xf32>
    %69 = arith.addf %67, %68 : vector<8x32xf32>
    %cst_30 = arith.constant 5.000000e-01 : f32
    %70 = vector.broadcast %cst_30 : f32 to vector<8x32xf32>
    %71 = arith.mulf %70, %69 : vector<8x32xf32>
    %cst_31 = arith.constant 0.707106769 : f32
    %72 = vector.broadcast %cst_31 : f32 to vector<8x32xf32>
    %73 = arith.mulf %69, %72 : vector<8x32xf32>
    %74 = math.erf %73 : vector<8x32xf32>
    %cst_32 = arith.constant 1.000000e+00 : f32
    %75 = vector.broadcast %cst_32 : f32 to vector<8x32xf32>
    %76 = arith.addf %75, %74 : vector<8x32xf32>
    %77 = arith.mulf %71, %76 : vector<8x32xf32>
    %c2_33 = arith.constant 2 : index
    %c0_34 = arith.constant 0 : index
    %c0_35 = arith.constant 0 : index
    %78 = vector.load %arg3[%c2_33, %c0_34, %c0_35] : memref<5x32x32xf32, #tpu.memory_space<vmem>>, vector<1x32x32xf32>
    %79 = vector.shape_cast %78 : vector<1x32x32xf32> to vector<32x32xf32>
    %cst_36 = arith.constant dense<0.000000e+00> : vector<8x32xf32>
    %80 = tpu.matmul %0, %79, %cst_36 {dimension_numbers = #tpu.dot_dimension_numbers<[1], [0], [0], [1], [0, 0, 1, 1], [], []>} : vector<8x32xf32>, vector<32x32xf32>, vector<8x32xf32> -> vector<8x32xf32>
    %81 = vector.broadcast %2 : vector<1x32xf32> to vector<8x32xf32>
    %82 = arith.addf %80, %81 : vector<8x32xf32>
    %cst_37 = arith.constant dense<0.000000e+00> : vector<8xf32>
    %83 = vector.multi_reduction <add>, %82, %cst_37 [1] : vector<8x32xf32> to vector<8xf32>
    %84 = vector.shape_cast %83 : vector<8xf32> to vector<8x1xf32>
    %cst_38 = arith.constant 3.200000e+01 : f32
    %85 = vector.broadcast %cst_38 : f32 to vector<8x1xf32>
    %86 = arith.divf %84, %85 : vector<8x1xf32>
    %87 = vector.broadcast %86 : vector<8x1xf32> to vector<8x32xf32>
    %88 = arith.subf %82, %87 : vector<8x32xf32>
    %89 = arith.mulf %88, %88 : vector<8x32xf32>
    %cst_39 = arith.constant dense<0.000000e+00> : vector<8xf32>
    %90 = vector.multi_reduction <add>, %89, %cst_39 [1] : vector<8x32xf32> to vector<8xf32>
    %91 = vector.shape_cast %90 : vector<8xf32> to vector<8x1xf32>
    %cst_40 = arith.constant 3.200000e+01 : f32
    %92 = vector.broadcast %cst_40 : f32 to vector<8x1xf32>
    %93 = arith.divf %91, %92 : vector<8x1xf32>
    %94 = vector.broadcast %86 : vector<8x1xf32> to vector<8x32xf32>
    %95 = arith.subf %82, %94 : vector<8x32xf32>
    %cst_41 = arith.constant 9.99999974E-6 : f32
    %96 = vector.broadcast %cst_41 : f32 to vector<8x1xf32>
    %97 = arith.addf %93, %96 : vector<8x1xf32>
    %98 = math.rsqrt %97 : vector<8x1xf32>
    %99 = vector.broadcast %98 : vector<8x1xf32> to vector<8x32xf32>
    %100 = arith.mulf %95, %99 : vector<8x32xf32>
    %101 = vector.broadcast %3 : vector<1x32xf32> to vector<8x32xf32>
    %102 = arith.mulf %100, %101 : vector<8x32xf32>
    %103 = vector.broadcast %4 : vector<1x32xf32> to vector<8x32xf32>
    %104 = arith.addf %102, %103 : vector<8x32xf32>
    %cst_42 = arith.constant 5.000000e-01 : f32
    %105 = vector.broadcast %cst_42 : f32 to vector<8x32xf32>
    %106 = arith.mulf %105, %104 : vector<8x32xf32>
    %cst_43 = arith.constant 0.707106769 : f32
    %107 = vector.broadcast %cst_43 : f32 to vector<8x32xf32>
    %108 = arith.mulf %104, %107 : vector<8x32xf32>
    %109 = math.erf %108 : vector<8x32xf32>
    %cst_44 = arith.constant 1.000000e+00 : f32
    %110 = vector.broadcast %cst_44 : f32 to vector<8x32xf32>
    %111 = arith.addf %110, %109 : vector<8x32xf32>
    %112 = arith.mulf %106, %111 : vector<8x32xf32>
    %c3_45 = arith.constant 3 : index
    %c0_46 = arith.constant 0 : index
    %c0_47 = arith.constant 0 : index
    %113 = vector.load %arg3[%c3_45, %c0_46, %c0_47] : memref<5x32x32xf32, #tpu.memory_space<vmem>>, vector<1x32x32xf32>
    %114 = vector.shape_cast %113 : vector<1x32x32xf32> to vector<32x32xf32>
    %cst_48 = arith.constant dense<0.000000e+00> : vector<8x32xf32>
    %115 = tpu.matmul %0, %114, %cst_48 {dimension_numbers = #tpu.dot_dimension_numbers<[1], [0], [0], [1], [0, 0, 1, 1], [], []>} : vector<8x32xf32>, vector<32x32xf32>, vector<8x32xf32> -> vector<8x32xf32>
    %c4_49 = arith.constant 4 : index
    %c0_50 = arith.constant 0 : index
    %c0_51 = arith.constant 0 : index
    %116 = vector.load %arg3[%c4_49, %c0_50, %c0_51] : memref<5x32x32xf32, #tpu.memory_space<vmem>>, vector<1x32x32xf32>
    %117 = vector.shape_cast %116 : vector<1x32x32xf32> to vector<32x32xf32>
    %cst_52 = arith.constant dense<0.000000e+00> : vector<8x32xf32>
    %118 = tpu.matmul %1, %117, %cst_52 {dimension_numbers = #tpu.dot_dimension_numbers<[1], [0], [0], [1], [0, 0, 1, 1], [], []>} : vector<8x32xf32>, vector<32x32xf32>, vector<8x32xf32> -> vector<8x32xf32>
    %119 = arith.addf %115, %118 : vector<8x32xf32>
    %120 = vector.broadcast %2 : vector<1x32xf32> to vector<8x32xf32>
    %121 = arith.addf %119, %120 : vector<8x32xf32>
    %cst_53 = arith.constant dense<0.000000e+00> : vector<8xf32>
    %122 = vector.multi_reduction <add>, %121, %cst_53 [1] : vector<8x32xf32> to vector<8xf32>
    %123 = vector.shape_cast %122 : vector<8xf32> to vector<8x1xf32>
    %cst_54 = arith.constant 3.200000e+01 : f32
    %124 = vector.broadcast %cst_54 : f32 to vector<8x1xf32>
    %125 = arith.divf %123, %124 : vector<8x1xf32>
    %126 = vector.broadcast %125 : vector<8x1xf32> to vector<8x32xf32>
    %127 = arith.subf %121, %126 : vector<8x32xf32>
    %128 = arith.mulf %127, %127 : vector<8x32xf32>
    %cst_55 = arith.constant dense<0.000000e+00> : vector<8xf32>
    %129 = vector.multi_reduction <add>, %128, %cst_55 [1] : vector<8x32xf32> to vector<8xf32>
    %130 = vector.shape_cast %129 : vector<8xf32> to vector<8x1xf32>
    %cst_56 = arith.constant 3.200000e+01 : f32
    %131 = vector.broadcast %cst_56 : f32 to vector<8x1xf32>
    %132 = arith.divf %130, %131 : vector<8x1xf32>
    %133 = vector.broadcast %125 : vector<8x1xf32> to vector<8x32xf32>
    %134 = arith.subf %121, %133 : vector<8x32xf32>
    %cst_57 = arith.constant 9.99999974E-6 : f32
    %135 = vector.broadcast %cst_57 : f32 to vector<8x1xf32>
    %136 = arith.addf %132, %135 : vector<8x1xf32>
    %137 = math.rsqrt %136 : vector<8x1xf32>
    %138 = vector.broadcast %137 : vector<8x1xf32> to vector<8x32xf32>
    %139 = arith.mulf %134, %138 : vector<8x32xf32>
    %140 = vector.broadcast %3 : vector<1x32xf32> to vector<8x32xf32>
    %141 = arith.mulf %139, %140 : vector<8x32xf32>
    %142 = vector.broadcast %4 : vector<1x32xf32> to vector<8x32xf32>
    %143 = arith.addf %141, %142 : vector<8x32xf32>
    %cst_58 = arith.constant 5.000000e-01 : f32
    %144 = vector.broadcast %cst_58 : f32 to vector<8x32xf32>
    %145 = arith.mulf %144, %143 : vector<8x32xf32>
    %cst_59 = arith.constant 0.707106769 : f32
    %146 = vector.broadcast %cst_59 : f32 to vector<8x32xf32>
    %147 = arith.mulf %143, %146 : vector<8x32xf32>
    %148 = math.erf %147 : vector<8x32xf32>
    %cst_60 = arith.constant 1.000000e+00 : f32
    %149 = vector.broadcast %cst_60 : f32 to vector<8x32xf32>
    %150 = arith.addf %149, %148 : vector<8x32xf32>
    %151 = arith.mulf %145, %150 : vector<8x32xf32>
    %c0_61 = arith.constant 0 : index
    %c0_62 = arith.constant 0 : index
    %c0_63 = arith.constant 0 : index
    %152 = vector.load %arg3[%c0_61, %c0_62, %c0_63] : memref<5x32x32xf32, #tpu.memory_space<vmem>>, vector<1x32x32xf32>
    %153 = vector.shape_cast %152 : vector<1x32x32xf32> to vector<32x32xf32>
    %cst_64 = arith.constant dense<0.000000e+00> : vector<8x32xf32>
    %154 = tpu.matmul %1, %153, %cst_64 {dimension_numbers = #tpu.dot_dimension_numbers<[1], [0], [0], [1], [0, 0, 1, 1], [], []>} : vector<8x32xf32>, vector<32x32xf32>, vector<8x32xf32> -> vector<8x32xf32>
    %155 = vector.broadcast %2 : vector<1x32xf32> to vector<8x32xf32>
    %156 = arith.addf %154, %155 : vector<8x32xf32>
    %cst_65 = arith.constant dense<0.000000e+00> : vector<8xf32>
    %157 = vector.multi_reduction <add>, %156, %cst_65 [1] : vector<8x32xf32> to vector<8xf32>
    %158 = vector.shape_cast %157 : vector<8xf32> to vector<8x1xf32>
    %cst_66 = arith.constant 3.200000e+01 : f32
    %159 = vector.broadcast %cst_66 : f32 to vector<8x1xf32>
    %160 = arith.divf %158, %159 : vector<8x1xf32>
    %161 = vector.broadcast %160 : vector<8x1xf32> to vector<8x32xf32>
    %162 = arith.subf %156, %161 : vector<8x32xf32>
    %163 = arith.mulf %162, %162 : vector<8x32xf32>
    %cst_67 = arith.constant dense<0.000000e+00> : vector<8xf32>
    %164 = vector.multi_reduction <add>, %163, %cst_67 [1] : vector<8x32xf32> to vector<8xf32>
    %165 = vector.shape_cast %164 : vector<8xf32> to vector<8x1xf32>
    %cst_68 = arith.constant 3.200000e+01 : f32
    %166 = vector.broadcast %cst_68 : f32 to vector<8x1xf32>
    %167 = arith.divf %165, %166 : vector<8x1xf32>
    %168 = vector.broadcast %160 : vector<8x1xf32> to vector<8x32xf32>
    %169 = arith.subf %156, %168 : vector<8x32xf32>
    %cst_69 = arith.constant 9.99999974E-6 : f32
    %170 = vector.broadcast %cst_69 : f32 to vector<8x1xf32>
    %171 = arith.addf %167, %170 : vector<8x1xf32>
    %172 = math.rsqrt %171 : vector<8x1xf32>
    %173 = vector.broadcast %172 : vector<8x1xf32> to vector<8x32xf32>
    %174 = arith.mulf %169, %173 : vector<8x32xf32>
    %175 = vector.broadcast %3 : vector<1x32xf32> to vector<8x32xf32>
    %176 = arith.mulf %174, %175 : vector<8x32xf32>
    %177 = vector.broadcast %4 : vector<1x32xf32> to vector<8x32xf32>
    %178 = arith.addf %176, %177 : vector<8x32xf32>
    %cst_70 = arith.constant 5.000000e-01 : f32
    %179 = vector.broadcast %cst_70 : f32 to vector<8x32xf32>
    %180 = arith.mulf %179, %178 : vector<8x32xf32>
    %cst_71 = arith.constant 0.707106769 : f32
    %181 = vector.broadcast %cst_71 : f32 to vector<8x32xf32>
    %182 = arith.mulf %178, %181 : vector<8x32xf32>
    %183 = math.erf %182 : vector<8x32xf32>
    %cst_72 = arith.constant 1.000000e+00 : f32
    %184 = vector.broadcast %cst_72 : f32 to vector<8x32xf32>
    %185 = arith.addf %184, %183 : vector<8x32xf32>
    %186 = arith.mulf %180, %185 : vector<8x32xf32>
    %c0_73 = arith.constant 0 : index
    %c0_74 = arith.constant 0 : index
    %c0_75 = arith.constant 0 : index
    %187 = vector.load %arg4[%c0_73, %c0_74, %c0_75] : memref<3x32x32xf32, #tpu.memory_space<vmem>>, vector<1x32x32xf32>
    %188 = vector.shape_cast %187 : vector<1x32x32xf32> to vector<32x32xf32>
    %c1_76 = arith.constant 1 : index
    %c0_77 = arith.constant 0 : index
    %c0_78 = arith.constant 0 : index
    %189 = vector.load %arg4[%c1_76, %c0_77, %c0_78] : memref<3x32x32xf32, #tpu.memory_space<vmem>>, vector<1x32x32xf32>
    %190 = vector.shape_cast %189 : vector<1x32x32xf32> to vector<32x32xf32>
    %c2_79 = arith.constant 2 : index
    %c0_80 = arith.constant 0 : index
    %c0_81 = arith.constant 0 : index
    %191 = vector.load %arg4[%c2_79, %c0_80, %c0_81] : memref<3x32x32xf32, #tpu.memory_space<vmem>>, vector<1x32x32xf32>
    %192 = vector.shape_cast %191 : vector<1x32x32xf32> to vector<32x32xf32>
    %cst_82 = arith.constant dense<0.000000e+00> : vector<8x32xf32>
    %193 = tpu.matmul %42, %188, %cst_82 {dimension_numbers = #tpu.dot_dimension_numbers<[1], [0], [0], [1], [0, 0, 1, 1], [], []>} : vector<8x32xf32>, vector<32x32xf32>, vector<8x32xf32> -> vector<8x32xf32>
    %cst_83 = arith.constant dense<0.000000e+00> : vector<8x32xf32>
    %194 = tpu.matmul %77, %190, %cst_83 {dimension_numbers = #tpu.dot_dimension_numbers<[1], [0], [0], [1], [0, 0, 1, 1], [], []>} : vector<8x32xf32>, vector<32x32xf32>, vector<8x32xf32> -> vector<8x32xf32>
    %195 = arith.addf %193, %194 : vector<8x32xf32>
    %cst_84 = arith.constant dense<0.000000e+00> : vector<8x32xf32>
    %196 = tpu.matmul %112, %192, %cst_84 {dimension_numbers = #tpu.dot_dimension_numbers<[1], [0], [0], [1], [0, 0, 1, 1], [], []>} : vector<8x32xf32>, vector<32x32xf32>, vector<8x32xf32> -> vector<8x32xf32>
    %197 = arith.addf %195, %196 : vector<8x32xf32>
    %198 = vector.broadcast %5 : vector<1x32xf32> to vector<8x32xf32>
    %199 = arith.addf %197, %198 : vector<8x32xf32>
    %cst_85 = arith.constant dense<0.000000e+00> : vector<8xf32>
    %200 = vector.multi_reduction <add>, %199, %cst_85 [1] : vector<8x32xf32> to vector<8xf32>
    %201 = vector.shape_cast %200 : vector<8xf32> to vector<8x1xf32>
    %cst_86 = arith.constant 3.200000e+01 : f32
    %202 = vector.broadcast %cst_86 : f32 to vector<8x1xf32>
    %203 = arith.divf %201, %202 : vector<8x1xf32>
    %204 = vector.broadcast %203 : vector<8x1xf32> to vector<8x32xf32>
    %205 = arith.subf %199, %204 : vector<8x32xf32>
    %206 = arith.mulf %205, %205 : vector<8x32xf32>
    %cst_87 = arith.constant dense<0.000000e+00> : vector<8xf32>
    %207 = vector.multi_reduction <add>, %206, %cst_87 [1] : vector<8x32xf32> to vector<8xf32>
    %208 = vector.shape_cast %207 : vector<8xf32> to vector<8x1xf32>
    %cst_88 = arith.constant 3.200000e+01 : f32
    %209 = vector.broadcast %cst_88 : f32 to vector<8x1xf32>
    %210 = arith.divf %208, %209 : vector<8x1xf32>
    %211 = vector.broadcast %203 : vector<8x1xf32> to vector<8x32xf32>
    %212 = arith.subf %199, %211 : vector<8x32xf32>
    %cst_89 = arith.constant 9.99999974E-6 : f32
    %213 = vector.broadcast %cst_89 : f32 to vector<8x1xf32>
    %214 = arith.addf %210, %213 : vector<8x1xf32>
    %215 = math.rsqrt %214 : vector<8x1xf32>
    %216 = vector.broadcast %215 : vector<8x1xf32> to vector<8x32xf32>
    %217 = arith.mulf %212, %216 : vector<8x32xf32>
    %218 = vector.broadcast %6 : vector<1x32xf32> to vector<8x32xf32>
    %219 = arith.mulf %217, %218 : vector<8x32xf32>
    %220 = vector.broadcast %7 : vector<1x32xf32> to vector<8x32xf32>
    %221 = arith.addf %219, %220 : vector<8x32xf32>
    %cst_90 = arith.constant 5.000000e-01 : f32
    %222 = vector.broadcast %cst_90 : f32 to vector<8x32xf32>
    %223 = arith.mulf %222, %221 : vector<8x32xf32>
    %cst_91 = arith.constant 0.707106769 : f32
    %224 = vector.broadcast %cst_91 : f32 to vector<8x32xf32>
    %225 = arith.mulf %221, %224 : vector<8x32xf32>
    %226 = math.erf %225 : vector<8x32xf32>
    %cst_92 = arith.constant 1.000000e+00 : f32
    %227 = vector.broadcast %cst_92 : f32 to vector<8x32xf32>
    %228 = arith.addf %227, %226 : vector<8x32xf32>
    %229 = arith.mulf %223, %228 : vector<8x32xf32>
    %cst_93 = arith.constant dense<0.000000e+00> : vector<8x32xf32>
    %230 = tpu.matmul %112, %188, %cst_93 {dimension_numbers = #tpu.dot_dimension_numbers<[1], [0], [0], [1], [0, 0, 1, 1], [], []>} : vector<8x32xf32>, vector<32x32xf32>, vector<8x32xf32> -> vector<8x32xf32>
    %cst_94 = arith.constant dense<0.000000e+00> : vector<8x32xf32>
    %231 = tpu.matmul %151, %190, %cst_94 {dimension_numbers = #tpu.dot_dimension_numbers<[1], [0], [0], [1], [0, 0, 1, 1], [], []>} : vector<8x32xf32>, vector<32x32xf32>, vector<8x32xf32> -> vector<8x32xf32>
    %232 = arith.addf %230, %231 : vector<8x32xf32>
    %cst_95 = arith.constant dense<0.000000e+00> : vector<8x32xf32>
    %233 = tpu.matmul %186, %192, %cst_95 {dimension_numbers = #tpu.dot_dimension_numbers<[1], [0], [0], [1], [0, 0, 1, 1], [], []>} : vector<8x32xf32>, vector<32x32xf32>, vector<8x32xf32> -> vector<8x32xf32>
    %234 = arith.addf %232, %233 : vector<8x32xf32>
    %235 = vector.broadcast %5 : vector<1x32xf32> to vector<8x32xf32>
    %236 = arith.addf %234, %235 : vector<8x32xf32>
    %cst_96 = arith.constant dense<0.000000e+00> : vector<8xf32>
    %237 = vector.multi_reduction <add>, %236, %cst_96 [1] : vector<8x32xf32> to vector<8xf32>
    %238 = vector.shape_cast %237 : vector<8xf32> to vector<8x1xf32>
    %cst_97 = arith.constant 3.200000e+01 : f32
    %239 = vector.broadcast %cst_97 : f32 to vector<8x1xf32>
    %240 = arith.divf %238, %239 : vector<8x1xf32>
    %241 = vector.broadcast %240 : vector<8x1xf32> to vector<8x32xf32>
    %242 = arith.subf %236, %241 : vector<8x32xf32>
    %243 = arith.mulf %242, %242 : vector<8x32xf32>
    %cst_98 = arith.constant dense<0.000000e+00> : vector<8xf32>
    %244 = vector.multi_reduction <add>, %243, %cst_98 [1] : vector<8x32xf32> to vector<8xf32>
    %245 = vector.shape_cast %244 : vector<8xf32> to vector<8x1xf32>
    %cst_99 = arith.constant 3.200000e+01 : f32
    %246 = vector.broadcast %cst_99 : f32 to vector<8x1xf32>
    %247 = arith.divf %245, %246 : vector<8x1xf32>
    %248 = vector.broadcast %240 : vector<8x1xf32> to vector<8x32xf32>
    %249 = arith.subf %236, %248 : vector<8x32xf32>
    %cst_100 = arith.constant 9.99999974E-6 : f32
    %250 = vector.broadcast %cst_100 : f32 to vector<8x1xf32>
    %251 = arith.addf %247, %250 : vector<8x1xf32>
    %252 = math.rsqrt %251 : vector<8x1xf32>
    %253 = vector.broadcast %252 : vector<8x1xf32> to vector<8x32xf32>
    %254 = arith.mulf %249, %253 : vector<8x32xf32>
    %255 = vector.broadcast %6 : vector<1x32xf32> to vector<8x32xf32>
    %256 = arith.mulf %254, %255 : vector<8x32xf32>
    %257 = vector.broadcast %7 : vector<1x32xf32> to vector<8x32xf32>
    %258 = arith.addf %256, %257 : vector<8x32xf32>
    %cst_101 = arith.constant 5.000000e-01 : f32
    %259 = vector.broadcast %cst_101 : f32 to vector<8x32xf32>
    %260 = arith.mulf %259, %258 : vector<8x32xf32>
    %cst_102 = arith.constant 0.707106769 : f32
    %261 = vector.broadcast %cst_102 : f32 to vector<8x32xf32>
    %262 = arith.mulf %258, %261 : vector<8x32xf32>
    %263 = math.erf %262 : vector<8x32xf32>
    %cst_103 = arith.constant 1.000000e+00 : f32
    %264 = vector.broadcast %cst_103 : f32 to vector<8x32xf32>
    %265 = arith.addf %264, %263 : vector<8x32xf32>
    %266 = arith.mulf %260, %265 : vector<8x32xf32>
    %cst_104 = arith.constant dense<0.000000e+00> : vector<8xf32>
    %267 = vector.multi_reduction <add>, %229, %cst_104 [1] : vector<8x32xf32> to vector<8xf32>
    %268 = vector.shape_cast %267 : vector<8xf32> to vector<8x1xf32>
    %cst_105 = arith.constant 3.200000e+01 : f32
    %269 = vector.broadcast %cst_105 : f32 to vector<8x1xf32>
    %270 = arith.divf %268, %269 : vector<8x1xf32>
    %271 = vector.broadcast %270 : vector<8x1xf32> to vector<8x32xf32>
    %272 = arith.subf %229, %271 : vector<8x32xf32>
    %273 = arith.mulf %272, %272 : vector<8x32xf32>
    %cst_106 = arith.constant dense<0.000000e+00> : vector<8xf32>
    %274 = vector.multi_reduction <add>, %273, %cst_106 [1] : vector<8x32xf32> to vector<8xf32>
    %275 = vector.shape_cast %274 : vector<8xf32> to vector<8x1xf32>
    %cst_107 = arith.constant 3.200000e+01 : f32
    %276 = vector.broadcast %cst_107 : f32 to vector<8x1xf32>
    %277 = arith.divf %275, %276 : vector<8x1xf32>
    %278 = vector.broadcast %270 : vector<8x1xf32> to vector<8x32xf32>
    %279 = arith.subf %229, %278 : vector<8x32xf32>
    %cst_108 = arith.constant 9.99999974E-6 : f32
    %280 = vector.broadcast %cst_108 : f32 to vector<8x1xf32>
    %281 = arith.addf %277, %280 : vector<8x1xf32>
    %282 = math.rsqrt %281 : vector<8x1xf32>
    %283 = vector.broadcast %282 : vector<8x1xf32> to vector<8x32xf32>
    %284 = arith.mulf %279, %283 : vector<8x32xf32>
    %c0_109 = arith.constant 0 : index
    %c0_110 = arith.constant 0 : index
    %c0_111 = arith.constant 0 : index
    %285 = vector.load %arg6[%c0_109, %c0_110, %c0_111] : memref<2x32x128xf32, #tpu.memory_space<vmem>>, vector<1x32x128xf32>
    %286 = vector.shape_cast %285 : vector<1x32x128xf32> to vector<32x128xf32>
    %cst_112 = arith.constant dense<0.000000e+00> : vector<8x128xf32>
    %287 = tpu.matmul %284, %286, %cst_112 {dimension_numbers = #tpu.dot_dimension_numbers<[1], [0], [0], [1], [0, 0, 1, 1], [], []>} : vector<8x32xf32>, vector<32x128xf32>, vector<8x128xf32> -> vector<8x128xf32>
    %cst_113 = arith.constant dense<0.000000e+00> : vector<8xf32>
    %288 = vector.multi_reduction <add>, %266, %cst_113 [1] : vector<8x32xf32> to vector<8xf32>
    %289 = vector.shape_cast %288 : vector<8xf32> to vector<8x1xf32>
    %cst_114 = arith.constant 3.200000e+01 : f32
    %290 = vector.broadcast %cst_114 : f32 to vector<8x1xf32>
    %291 = arith.divf %289, %290 : vector<8x1xf32>
    %292 = vector.broadcast %291 : vector<8x1xf32> to vector<8x32xf32>
    %293 = arith.subf %266, %292 : vector<8x32xf32>
    %294 = arith.mulf %293, %293 : vector<8x32xf32>
    %cst_115 = arith.constant dense<0.000000e+00> : vector<8xf32>
    %295 = vector.multi_reduction <add>, %294, %cst_115 [1] : vector<8x32xf32> to vector<8xf32>
    %296 = vector.shape_cast %295 : vector<8xf32> to vector<8x1xf32>
    %cst_116 = arith.constant 3.200000e+01 : f32
    %297 = vector.broadcast %cst_116 : f32 to vector<8x1xf32>
    %298 = arith.divf %296, %297 : vector<8x1xf32>
    %299 = vector.broadcast %291 : vector<8x1xf32> to vector<8x32xf32>
    %300 = arith.subf %266, %299 : vector<8x32xf32>
    %cst_117 = arith.constant 9.99999974E-6 : f32
    %301 = vector.broadcast %cst_117 : f32 to vector<8x1xf32>
    %302 = arith.addf %298, %301 : vector<8x1xf32>
    %303 = math.rsqrt %302 : vector<8x1xf32>
    %304 = vector.broadcast %303 : vector<8x1xf32> to vector<8x32xf32>
    %305 = arith.mulf %300, %304 : vector<8x32xf32>
    %c1_118 = arith.constant 1 : index
    %c0_119 = arith.constant 0 : index
    %c0_120 = arith.constant 0 : index
    %306 = vector.load %arg6[%c1_118, %c0_119, %c0_120] : memref<2x32x128xf32, #tpu.memory_space<vmem>>, vector<1x32x128xf32>
    %307 = vector.shape_cast %306 : vector<1x32x128xf32> to vector<32x128xf32>
    %cst_121 = arith.constant dense<0.000000e+00> : vector<8x128xf32>
    %308 = tpu.matmul %305, %307, %cst_121 {dimension_numbers = #tpu.dot_dimension_numbers<[1], [0], [0], [1], [0, 0, 1, 1], [], []>} : vector<8x32xf32>, vector<32x128xf32>, vector<8x128xf32> -> vector<8x128xf32>
    %309 = arith.addf %287, %308 : vector<8x128xf32>
    %c0_122 = arith.constant 0 : index
    %c0_123 = arith.constant 0 : index
    %310 = vector.load %arg7[%c0_122, %c0_123] : memref<1x128xf32, #tpu.memory_space<vmem>>, vector<1x128xf32>
    %311 = vector.broadcast %310 : vector<1x128xf32> to vector<8x128xf32>
    %312 = arith.addf %309, %311 : vector<8x128xf32>
    %c0_124 = arith.constant 0 : index
    %c0_125 = arith.constant 0 : index
    %313 = vector.load %arg8[%c0_124, %c0_125] : memref<8x128xf32, #tpu.memory_space<vmem>>, vector<8x128xf32>
    tpu.vector_store %arg8[%c0_124, %c0_125], %312 {strides = array<i32>} : memref<8x128xf32, #tpu.memory_space<vmem>>, vector<8x128xf32>,
    return
  }
  func.func @transform_0(%arg0: i32) -> (i32, i32) {
    %c0_i32 = arith.constant 0 : i32
    %c0_i32_0 = arith.constant 0 : i32
    return %arg0, %c0_i32 : i32, i32
  }
  func.func @transform_1(%arg0: i32) -> (i32, i32) {
    %c0_i32 = arith.constant 0 : i32
    %c0_i32_0 = arith.constant 0 : i32
    return %arg0, %c0_i32 : i32, i32
  }
  func.func @transform_2(%arg0: i32) -> (i32, i32, i32) {
    %c0_i32 = arith.constant 0 : i32
    %c0_i32_0 = arith.constant 0 : i32
    %c0_i32_1 = arith.constant 0 : i32
    %c0_i32_2 = arith.constant 0 : i32
    return %c0_i32, %c0_i32_0, %c0_i32_1 : i32, i32, i32
  }
  func.func @transform_3(%arg0: i32) -> (i32, i32, i32) {
    %c0_i32 = arith.constant 0 : i32
    %c0_i32_0 = arith.constant 0 : i32
    %c0_i32_1 = arith.constant 0 : i32
    %c0_i32_2 = arith.constant 0 : i32
    return %c0_i32, %c0_i32_0, %c0_i32_1 : i32, i32, i32
  }
  func.func @transform_4(%arg0: i32) -> (i32, i32) {
    %c0_i32 = arith.constant 0 : i32
    %c0_i32_0 = arith.constant 0 : i32
    %c0_i32_1 = arith.constant 0 : i32
    return %c0_i32, %c0_i32_0 : i32, i32
  }
  func.func @transform_5(%arg0: i32) -> (i32, i32, i32) {
    %c0_i32 = arith.constant 0 : i32
    %c0_i32_0 = arith.constant 0 : i32
    %c0_i32_1 = arith.constant 0 : i32
    %c0_i32_2 = arith.constant 0 : i32
    return %c0_i32, %c0_i32_0, %c0_i32_1 : i32, i32, i32
  }
  func.func @transform_6(%arg0: i32) -> (i32, i32) {
    %c0_i32 = arith.constant 0 : i32
    %c0_i32_0 = arith.constant 0 : i32
    %c0_i32_1 = arith.constant 0 : i32
    return %c0_i32, %c0_i32_0 : i32, i32
  }
  func.func @transform_7(%arg0: i32) -> (i32, i32) {
    %c0_i32 = arith.constant 0 : i32
    %c0_i32_0 = arith.constant 0 : i32
    return %arg0, %c0_i32 : i32, i32
  }
}

</mosaic_0001>

<llo_original>
// kernel: tpu_custom_call.1
$region0: #{tpu_custom_call.1}
  #allocation0 [shape = 'u32[]', space=smem, size = 0x4, offset = 0x4, fixed_abs, tag = 'smem constant byte address 0x4 - core index']
  #allocation1 [shape = 'u32[144,128]{1,0:T(1,128)}', space=vmem, size = 0x12000, scoped, tag = 'internal scratch']
  %s0 = inlined_call_operand.hbm [shape: f32[16,32], index: 0, kind: input, shape index: {}]
  %s1 = inlined_call_operand.hbm [shape: f32[16,32], index: 1, kind: input, shape index: {}]
  %s2 = inlined_call_operand.hbm [shape: f32[5,32,32], index: 2, kind: input, shape index: {}]
  %s3 = inlined_call_operand.hbm [shape: f32[3,32,32], index: 3, kind: input, shape index: {}]
  %s4 = inlined_call_operand.vmem [shape: f32[6,32], index: 4, kind: input, shape index: {}]
  %s5 = inlined_call_operand.hbm [shape: f32[2,32,128], index: 5, kind: input, shape index: {}]
  %s6 = inlined_call_operand.vmem [shape: f32[1,128], index: 6, kind: input, shape index: {}]
  %s7 = inlined_call_operand.hbm [shape: f32[16,128], index: 7, kind: output, shape index: {}]
  %s8 = sld [smem:[#allocation0]]
  $region81: #{tpu_custom_call.1} parent=0
    _
  %s10 = ssub.s32 1, %s8
  %s11 = scalar_select 0, %s10, %s8
  $region1: #{tpu_custom_call.1} parent=0
    #allocation2 [shape = 'u8[8192]{0}', space=vmem, size = 0x2000, scoped, tag = 'input window, operand 0']
    #allocation3 [shape = 's32[2]{0}', space=sflag, size = 0x8, scoped, tag = 'scoped memory for tpu_custom_call.1']
    #allocation4 [shape = 's32[2]{0}', space=sflag, size = 0x8, scoped, tag = 'scoped memory for tpu_custom_call.1']
    #allocation5 [shape = 'u8[8192]{0}', space=vmem, size = 0x2000, scoped, tag = 'input window, operand 1']
    #allocation6 [shape = 's32[2]{0}', space=sflag, size = 0x8, scoped, tag = 'scoped memory for tpu_custom_call.1']
    #allocation7 [shape = 'u8[81920]{0}', space=vmem, size = 0x14000, scoped, tag = 'input window, operand 2, single buffered']
    #allocation8 [shape = 'u8[49152]{0}', space=vmem, size = 0xc000, scoped, tag = 'input window, operand 3, single buffered']
    #allocation9 [shape = 's32[1]{0}', space=sflag, size = 0x4, scoped, tag = 'scoped memory for tpu_custom_call.1']
    #allocation10 [shape = 'u8[32768]{0}', space=vmem, size = 0x8000, scoped, tag = 'input window, operand 5, single buffered']
    #allocation11 [shape = 'u8[8192]{0}', space=vmem, size = 0x2000, scoped, tag = 'output window, operand 0']
    %12 = vsyncpa [#allocation3], 0
    %s13 = scalar_lea.sflag [#allocation3], 1
    %14 = vsyncpa %s13, 0
    %15 = vsyncpa [#allocation6], 0
    %s16 = scalar_lea.sflag [#allocation6], 1
    %17 = vsyncpa %s16, 0
    %18 = vsyncpa [#allocation9], 0
    %19 = vsyncpa [#allocation4], 0
    %s20 = scalar_lea.sflag [#allocation4], 1
    %21 = vsyncpa %s20, 0
    loop: start=0, step=1, limit=4
    $region2: #{tpu_custom_call.1} parent=1 // loop_pre_header
      _
    $region3: #{tpu_custom_call.1} parent=1 // loop_header
      %s23 = sphi 0, %s27
      %p24 = scmp.ge.s32.totalorder %s23, 4
      %s33 = sphi 0, %s35
      %s36 = sphi 0, %s33
      %s37 = sphi 0, %s36
      %s53 = sphi 0, %s37
      %s59 = sphi 0, %s61
      %s62 = sphi 0, %s59
      %s63 = sphi 0, %s62
      %s79 = sphi 0, %s63
      %s83 = sphi 0, %s83
      %s85 = sphi 0, %s83
      %s86 = sphi 0, %s85
      %s100 = sphi 0, %s86
      %s104 = sphi 0, %s104
      %s106 = sphi 0, %s104
      %s107 = sphi 0, %s106
      %s121 = sphi 0, %s107
      %s125 = sphi 0, %s125
      %s127 = sphi 0, %s125
      %s128 = sphi 0, %s127
      %s142 = sphi 0, %s128
      %s146 = sphi 0, %s146
      %s148 = sphi 0, %s146
      %s149 = sphi 0, %s148
      %s163 = sphi 0, %s149
      %s167 = sphi 0, %s167
      %s169 = sphi 0, %s167
      %s170 = sphi 0, %s169
      %s184 = sphi 0, %s170
      %s190 = sphi 0, %s192
      %s193 = sphi 0, %s190
      %s194 = sphi 0, %s193
      %s210 = sphi 0, %s194
    $region4: #{tpu_custom_call.1} parent=1 // loop_header_branch
      %26 = sbr.rel (%p24) target = $region8
    $region5: #{tpu_custom_call.1} parent=1 // loop_body
      %s28 = ssub.s32 %s23, 1
      %s29 = ssub.s32 %s23, 2
      %s30 = sadd.s32 %s23, 1
      %s31 = ssub.s32 %s23, %s30
      %p32 = scmp.eq.s32.totalorder %s31, 0
      %s34 = sadd.s32 %s33, 1
      %s35 = scalar_select %p32, %s33, %s34
      %p38 = pneg %p32
      %p39 = scmp.eq.s32.totalorder %s23, 1
      %p40 = por %p38, %p39
      %p41 = scmp.ne.s32.totalorder %s33, %s36
      %p42 = scmp.eq.s32.totalorder %s23, 0
      %p43 = por %p41, %p42
      %p44 = scmp.ne.s32.totalorder %s33, %s36
      %p45 = scmp.eq.s32.totalorder %s28, 1
      %p46 = por %p44, %p45
      %p47 = scmp.ne.s32.totalorder %s36, %s37
      %p48 = scmp.eq.s32.totalorder %s28, 0
      %p49 = por %p47, %p48
      %p50 = scmp.ne.s32.totalorder %s36, %s37
      %p51 = scmp.eq.s32.totalorder %s29, 1
      %p52 = por %p50, %p51
      %p54 = scmp.ne.s32.totalorder %s37, %s53
      %p55 = scmp.eq.s32.totalorder %s29, 0
      %p56 = por %p54, %p55
      %s57 = ssub.s32 %s23, %s30
      %p58 = scmp.eq.s32.totalorder %s57, 0
      %s60 = sadd.s32 %s59, 1
      %s61 = scalar_select %p58, %s59, %s60
      %p64 = pneg %p58
      %p65 = scmp.eq.s32.totalorder %s23, 1
      %p66 = por %p64, %p65
      %p67 = scmp.ne.s32.totalorder %s59, %s62
      %p68 = scmp.eq.s32.totalorder %s23, 0
      %p69 = por %p67, %p68
      %p70 = scmp.ne.s32.totalorder %s59, %s62
      %p71 = scmp.eq.s32.totalorder %s28, 1
      %p72 = por %p70, %p71
      %p73 = scmp.ne.s32.totalorder %s62, %s63
      %p74 = scmp.eq.s32.totalorder %s28, 0
      %p75 = por %p73, %p74
      %p76 = scmp.ne.s32.totalorder %s62, %s63
      %p77 = scmp.eq.s32.totalorder %s29, 1
      %p78 = por %p76, %p77
      %p80 = scmp.ne.s32.totalorder %s63, %s79
      %p81 = scmp.eq.s32.totalorder %s29, 0
      %p82 = por %p80, %p81
      %s84 = sadd.s32 %s83, 1
      %p87 = scmp.eq.s32.totalorder %s23, 1
      %p88 = scmp.ne.s32.totalorder %s83, %s85
      %p89 = scmp.eq.s32.totalorder %s23, 0
      %p90 = por %p88, %p89
      %p91 = scmp.ne.s32.totalorder %s83, %s85
      %p92 = scmp.eq.s32.totalorder %s28, 1
      %p93 = por %p91, %p92
      %p94 = scmp.ne.s32.totalorder %s85, %s86
      %p95 = scmp.eq.s32.totalorder %s28, 0
      %p96 = por %p94, %p95
      %p97 = scmp.ne.s32.totalorder %s85, %s86
      %p98 = scmp.eq.s32.totalorder %s29, 1
      %p99 = por %p97, %p98
      %p101 = scmp.ne.s32.totalorder %s86, %s100
      %p102 = scmp.eq.s32.totalorder %s29, 0
      %p103 = por %p101, %p102
      %s105 = sadd.s32 %s104, 1
      %p108 = scmp.eq.s32.totalorder %s23, 1
      %p109 = scmp.ne.s32.totalorder %s104, %s106
      %p110 = scmp.eq.s32.totalorder %s23, 0
      %p111 = por %p109, %p110
      %p112 = scmp.ne.s32.totalorder %s104, %s106
      %p113 = scmp.eq.s32.totalorder %s28, 1
      %p114 = por %p112, %p113
      %p115 = scmp.ne.s32.totalorder %s106, %s107
      %p116 = scmp.eq.s32.totalorder %s28, 0
      %p117 = por %p115, %p116
      %p118 = scmp.ne.s32.totalorder %s106, %s107
      %p119 = scmp.eq.s32.totalorder %s29, 1
      %p120 = por %p118, %p119
      %p122 = scmp.ne.s32.totalorder %s107, %s121
      %p123 = scmp.eq.s32.totalorder %s29, 0
      %p124 = por %p122, %p123
      %s126 = sadd.s32 %s125, 1
      %p129 = scmp.eq.s32.totalorder %s23, 1
      %p130 = scmp.ne.s32.totalorder %s125, %s127
      %p131 = scmp.eq.s32.totalorder %s23, 0
      %p132 = por %p130, %p131
      %p133 = scmp.ne.s32.totalorder %s125, %s127
      %p134 = scmp.eq.s32.totalorder %s28, 1
      %p135 = por %p133, %p134
      %p136 = scmp.ne.s32.totalorder %s127, %s128
      %p137 = scmp.eq.s32.totalorder %s28, 0
      %p138 = por %p136, %p137
      %p139 = scmp.ne.s32.totalorder %s127, %s128
      %p140 = scmp.eq.s32.totalorder %s29, 1
      %p141 = por %p139, %p140
      %p143 = scmp.ne.s32.totalorder %s128, %s142
      %p144 = scmp.eq.s32.totalorder %s29, 0
      %p145 = por %p143, %p144
      %s147 = sadd.s32 %s146, 1
      %p150 = scmp.eq.s32.totalorder %s23, 1
      %p151 = scmp.ne.s32.totalorder %s146, %s148
      %p152 = scmp.eq.s32.totalorder %s23, 0
      %p153 = por %p151, %p152
      %p154 = scmp.ne.s32.totalorder %s146, %s148
      %p155 = scmp.eq.s32.totalorder %s28, 1
      %p156 = por %p154, %p155
      %p157 = scmp.ne.s32.totalorder %s148, %s149
      %p158 = scmp.eq.s32.totalorder %s28, 0
      %p159 = por %p157, %p158
      %p160 = scmp.ne.s32.totalorder %s148, %s149
      %p161 = scmp.eq.s32.totalorder %s29, 1
      %p162 = por %p160, %p161
      %p164 = scmp.ne.s32.totalorder %s149, %s163
      %p165 = scmp.eq.s32.totalorder %s29, 0
      %p166 = por %p164, %p165
      %s168 = sadd.s32 %s167, 1
      %p171 = scmp.eq.s32.totalorder %s23, 1
      %p172 = scmp.ne.s32.totalorder %s167, %s169
      %p173 = scmp.eq.s32.totalorder %s23, 0
      %p174 = por %p172, %p173
      %p175 = scmp.ne.s32.totalorder %s167, %s169
      %p176 = scmp.eq.s32.totalorder %s28, 1
      %p177 = por %p175, %p176
      %p178 = scmp.ne.s32.totalorder %s169, %s170
      %p179 = scmp.eq.s32.totalorder %s28, 0
      %p180 = por %p178, %p179
      %p181 = scmp.ne.s32.totalorder %s169, %s170
      %p182 = scmp.eq.s32.totalorder %s29, 1
      %p183 = por %p181, %p182
      %p185 = scmp.ne.s32.totalorder %s170, %s184
      %p186 = scmp.eq.s32.totalorder %s29, 0
      %p187 = por %p185, %p186
      %s188 = ssub.s32 %s23, %s30
      %p189 = scmp.eq.s32.totalorder %s188, 0
      %s191 = sadd.s32 %s190, 1
      %s192 = scalar_select %p189, %s190, %s191
      %p195 = pneg %p189
      %p196 = scmp.eq.s32.totalorder %s23, 1
      %p197 = por %p195, %p196
      %p198 = scmp.ne.s32.totalorder %s190, %s193
      %p199 = scmp.eq.s32.totalorder %s23, 0
      %p200 = por %p198, %p199
      %p201 = scmp.ne.s32.totalorder %s190, %s193
      %p202 = scmp.eq.s32.totalorder %s28, 1
      %p203 = por %p201, %p202
      %p204 = scmp.ne.s32.totalorder %s193, %s194
      %p205 = scmp.eq.s32.totalorder %s28, 0
      %p206 = por %p204, %p205
      %p207 = scmp.ne.s32.totalorder %s193, %s194
      %p208 = scmp.eq.s32.totalorder %s29, 1
      %p209 = por %p207, %p208
      %p211 = scmp.ne.s32.totalorder %s194, %s210
      %p212 = scmp.eq.s32.totalorder %s29, 0
      %p213 = por %p211, %p212
      %p214 = scmp.le.s32.totalorder 1, %s23
      %p215 = scmp.lt.s32.totalorder %s23, 3
      %p216 = pnand %p214, %p215
      %p217 = pneg %p216
      // Predicated region
      $region9: #{tpu_custom_call.1} parent=5 // pred_check
        _
      $region10: #{tpu_custom_call.1} parent=5 // pred_check_branch
        %219 = sbr.rel (%p216) target = $region12
      $region11: #{tpu_custom_call.1} parent=5 // pred_region
        %s220 = ssub.s32 %s23, 1
        // Predicated region
        $region13: #{tpu_custom_call.1} parent=11 // pred_check
          %p221 = pneg %p96
        $region14: #{tpu_custom_call.1} parent=11 // pred_check_branch
          %223 = sbr.rel (%p221) target = $region16
        $region15: #{tpu_custom_call.1} parent=11 // pred_region
          %s225 = ssub.s32 2560, 2560
          %226 = vsyncadd [#allocation6], %s225
          %s227 = sshll.u32 [#allocation7], 4
          %s228 = int_to_ptr.vmem [resolvable:$true] %s227
          %233 = dma.hbm_to_vmem [thread:$0]  %s2, 2560, %s228, [#allocation6], 128, 128, 8
        $region16: #{tpu_custom_call.1} parent=11 // pred_fallthru
          _
        // Predicated region
        $region17: #{tpu_custom_call.1} parent=11 // pred_check
          %p234 = pneg %p117
        $region18: #{tpu_custom_call.1} parent=11 // pred_check_branch
          %236 = sbr.rel (%p234) target = $region20
        $region19: #{tpu_custom_call.1} parent=11 // pred_region
          %s238 = ssub.s32 1536, 1536
          %239 = vsyncadd [#allocation9], %s238
          %s240 = sshll.u32 [#allocation8], 4
          %s241 = int_to_ptr.vmem [resolvable:$true] %s240
          %246 = dma.hbm_to_vmem [thread:$0]  %s3, 1536, %s241, [#allocation9], 128, 128, 8
        $region20: #{tpu_custom_call.1} parent=11 // pred_fallthru
          _
        // Predicated region
        $region21: #{tpu_custom_call.1} parent=11 // pred_check
          %p247 = pneg %p138
        $region22: #{tpu_custom_call.1} parent=11 // pred_check_branch
          %249 = sbr.rel (%p247) target = $region24
        $region23: #{tpu_custom_call.1} parent=11 // pred_region
          _
        $region24: #{tpu_custom_call.1} parent=11 // pred_fallthru
          _
        // Predicated region
        $region25: #{tpu_custom_call.1} parent=11 // pred_check
          %p250 = pneg %p159
        $region26: #{tpu_custom_call.1} parent=11 // pred_check_branch
          %252 = sbr.rel (%p250) target = $region28
        $region27: #{tpu_custom_call.1} parent=11 // pred_region
          %s254 = ssub.s32 1024, 1024
          %255 = vsyncadd [#allocation9], %s254
          %s256 = sshll.u32 [#allocation10], 4
          %s257 = int_to_ptr.vmem [resolvable:$true] %s256
          %262 = dma.hbm_to_vmem [thread:$0]  %s5, 1024, %s257, [#allocation9], 128, 128, 8
        $region28: #{tpu_custom_call.1} parent=11 // pred_fallthru
          _
        // Predicated region
        $region29: #{tpu_custom_call.1} parent=11 // pred_check
          %p263 = pneg %p180
        $region30: #{tpu_custom_call.1} parent=11 // pred_check_branch
          %265 = sbr.rel (%p263) target = $region32
        $region31: #{tpu_custom_call.1} parent=11 // pred_region
          _
        $region32: #{tpu_custom_call.1} parent=11 // pred_fallthru
          _
      $region12: #{tpu_custom_call.1} parent=5 // pred_fallthru
        _
      %p266 = scmp.lt.s32.totalorder %s23, 2
      // Predicated region
      $region33: #{tpu_custom_call.1} parent=5 // pred_check
        %p267 = pneg %p266
      $region34: #{tpu_custom_call.1} parent=5 // pred_check_branch
        %269 = sbr.rel (%p267) target = $region36
      $region35: #{tpu_custom_call.1} parent=5 // pred_region
        // Predicated region
        $region37: #{tpu_custom_call.1} parent=35 // pred_check
          %p270 = pneg %p43
        $region38: #{tpu_custom_call.1} parent=35 // pred_check_branch
          %272 = sbr.rel (%p270) target = $region40
        $region39: #{tpu_custom_call.1} parent=35 // pred_region
          %s273 = sand.u32 %s33, 1
          %s274 = scalar_lea.sflag [#allocation3], %s273
          %s275 = sand.u32 %s33, 1
          %s276 = smul.addr %s275, 8
          %s277 = scalar_lea.vmem [#allocation2], %s276
          %s279 = ssub.s32 128, 128
          %280 = vsyncadd %s274, %s279
          %s281 = smul.addr %s23, 128
          %s282 = scalar_lea.hbm %s0, %s281
          %s284 = sshll.u32 %s277, 4
          %s285 = int_to_ptr.vmem [resolvable:$true] %s284
          %287 = dma.hbm_to_vmem [thread:$0]  %s282, 128, %s285, %s274
        $region40: #{tpu_custom_call.1} parent=35 // pred_fallthru
          _
        // Predicated region
        $region41: #{tpu_custom_call.1} parent=35 // pred_check
          %p288 = pneg %p69
        $region42: #{tpu_custom_call.1} parent=35 // pred_check_branch
          %290 = sbr.rel (%p288) target = $region44
        $region43: #{tpu_custom_call.1} parent=35 // pred_region
          %s291 = sand.u32 %s23, 1
          %s292 = scalar_lea.sflag [#allocation6], %s291
          %s293 = sand.u32 %s59, 1
          %s294 = smul.addr %s293, 8
          %s295 = scalar_lea.vmem [#allocation5], %s294
          %s297 = ssub.s32 128, 128
          %298 = vsyncadd %s292, %s297
          %s299 = smul.addr %s23, 128
          %s300 = scalar_lea.hbm %s1, %s299
          %s302 = sshll.u32 %s295, 4
          %s303 = int_to_ptr.vmem [resolvable:$true] %s302
          %305 = dma.hbm_to_vmem [thread:$0]  %s300, 128, %s303, %s292
        $region44: #{tpu_custom_call.1} parent=35 // pred_fallthru
          _
      $region36: #{tpu_custom_call.1} parent=5 // pred_fallthru
        _
      %p306 = scmp.le.s32.totalorder 1, %s23
      %p307 = scmp.lt.s32.totalorder %s23, 3
      %p308 = pnand %p306, %p307
      %p309 = pneg %p308
      // Predicated region
      $region45: #{tpu_custom_call.1} parent=5 // pred_check
        _
      $region46: #{tpu_custom_call.1} parent=5 // pred_check_branch
        %311 = sbr.rel (%p308) target = $region48
      $region47: #{tpu_custom_call.1} parent=5 // pred_region
        %s312 = ssub.s32 %s23, 1
        %s313 = sand.u32 %s36, 1
        %s314 = scalar_lea.sflag [#allocation3], %s313
        %s315 = sand.u32 %s36, 1
        %s316 = smul.addr %s315, 8
        %s317 = scalar_lea.vmem [#allocation2], %s316
        // Predicated region
        $region49: #{tpu_custom_call.1} parent=47 // pred_check
          %p318 = pneg %p49
        $region50: #{tpu_custom_call.1} parent=47 // pred_check_branch
          %320 = sbr.rel (%p318) target = $region52
        $region51: #{tpu_custom_call.1} parent=47 // pred_region
          %321 = dma.done %s314, 128
        $region52: #{tpu_custom_call.1} parent=47 // pred_fallthru
          _
        %s322 = sand.u32 %s28, 1
        %s323 = scalar_lea.sflag [#allocation6], %s322
        %s324 = sand.u32 %s62, 1
        %s325 = smul.addr %s324, 8
        %s326 = scalar_lea.vmem [#allocation5], %s325
        // Predicated region
        $region53: #{tpu_custom_call.1} parent=47 // pred_check
          %p327 = pneg %p75
        $region54: #{tpu_custom_call.1} parent=47 // pred_check_branch
          %329 = sbr.rel (%p327) target = $region56
        $region55: #{tpu_custom_call.1} parent=47 // pred_region
          %330 = dma.done %s323, 128
        $region56: #{tpu_custom_call.1} parent=47 // pred_fallthru
          _
        // Predicated region
        $region57: #{tpu_custom_call.1} parent=47 // pred_check
          %p331 = pneg %p96
        $region58: #{tpu_custom_call.1} parent=47 // pred_check_branch
          %333 = sbr.rel (%p331) target = $region60
        $region59: #{tpu_custom_call.1} parent=47 // pred_region
          %334 = dma.done [#allocation6], 2560
        $region60: #{tpu_custom_call.1} parent=47 // pred_fallthru
          _
        // Predicated region
        $region61: #{tpu_custom_call.1} parent=47 // pred_check
          %p335 = pneg %p117
        $region62: #{tpu_custom_call.1} parent=47 // pred_check_branch
          %337 = sbr.rel (%p335) target = $region64
        $region63: #{tpu_custom_call.1} parent=47 // pred_region
          %338 = dma.done [#allocation9], 1536
        $region64: #{tpu_custom_call.1} parent=47 // pred_fallthru
          _
        // Predicated region
        $region65: #{tpu_custom_call.1} parent=47 // pred_check
          %p339 = pneg %p159
        $region66: #{tpu_custom_call.1} parent=47 // pred_check_branch
          %341 = sbr.rel (%p339) target = $region68
        $region67: #{tpu_custom_call.1} parent=47 // pred_region
          %342 = dma.done [#allocation9], 1024
        $region68: #{tpu_custom_call.1} parent=47 // pred_fallthru
          _
        %s343 = sand.u32 %s36, 1
        %s344 = scalar_lea.sflag [#allocation3], %s343
        %s345 = sand.u32 %s36, 1
        %s346 = smul.addr %s345, 8
        %s347 = scalar_lea.vmem [#allocation2], %s346
        %p348 = pneg %p49
        %p349 = pneg %p46
        %s350 = sand.u32 %s28, 1
        %s351 = scalar_lea.sflag [#allocation6], %s350
        %s352 = sand.u32 %s62, 1
        %s353 = smul.addr %s352, 8
        %s354 = scalar_lea.vmem [#allocation5], %s353
        %p355 = pneg %p75
        %p356 = pneg %p72
        %p357 = pneg %p96
        %p358 = pneg %p93
        %p359 = pneg %p117
        %p360 = pneg %p114
        %p361 = pneg %p138
        %p362 = pneg %p135
        %p363 = pneg %p159
        %p364 = pneg %p156
        %p365 = pneg %p180
        %p366 = pneg %p177
        %p367 = pneg %p206
        %p368 = pneg %p203
        %s369 = sand.u32 %s193, 1
        %s370 = scalar_lea.sflag [#allocation4], %s369
        %s371 = sand.u32 %s193, 1
        %s372 = smul.addr %s371, 8
        %s373 = scalar_lea.vmem [#allocation11], %s372
        %v374 = vld [vmem:[%s317] sm:$0xff]
        %v375 = vld [vmem:[%s326] sm:$0xff]
        %v376 = vld [vmem:[%s4] sm:$0x1]
        %v377 = vld [vmem:[%s4 + $0x1] sm:$0x1]
        %v378 = vld [vmem:[%s4 + $0x2] sm:$0x1]
        %v379 = vld [vmem:[%s4 + $0x3] sm:$0x1]
        %v380 = vld [vmem:[%s4 + $0x4] sm:$0x1]
        %v381 = vld [vmem:[%s4 + $0x5] sm:$0x1]
        %v382 = vld [vmem:[#allocation7] sm:$0xff]
        %v383 = vld [vmem:[#allocation7 + $0x8] sm:$0xff]
        %v384 = vld [vmem:[#allocation7 + $0x10] sm:$0xff]
        %v385 = vld [vmem:[#allocation7 + $0x18] sm:$0xff]
        %v386 = vlaneseq
        %v387 = vshrl.u32 %v386, 7
        %v388 = vsub.s32 0, %v387
        %v389 = vrot.slane %v376, %v388
        %vm390 = vcmask 261120
        %v392 = vsel %vm390, %v374, 0
        %394 = vmatprep.subr.mxu0 0.0
        %395 = vmatpush1.msra.mxu0 %v382
        %396 = vmatprep.subr.mxu0 0.0
        %397 = vmatpush1.msra.mxu0 %v383
        %398 = vmatprep.subr.mxu0 0.0
        %399 = vmatpush1.msra.mxu0 %v384
        %400 = vmatprep.subr.mxu0 0.0
        %401 = vmatpush1.msra.mxu0 %v385
        %402 = vmatprep.subr.mxu0 0.0
        %403 = vmatpush1.msra.mxu0 0.0
        %404 = vmatprep.subr.mxu0 0.0
        %405 = vmatpush1.msra.mxu0 0.0
        %406 = vmatprep.subr.mxu0 0.0
        %407 = vmatpush1.msra.mxu0 0.0
        %408 = vmatprep.subr.mxu0 0.0
        %409 = vmatpush1.msra.mxu0 0.0
        %410 = vmatprep.subr.mxu0 0.0
        %411 = vmatpush1.msra.mxu0 0.0
        %412 = vmatprep.subr.mxu0 0.0
        %413 = vmatpush1.msra.mxu0 0.0
        %414 = vmatprep.subr.mxu0 0.0
        %415 = vmatpush1.msra.mxu0 0.0
        %416 = vmatprep.subr.mxu0 0.0
        %417 = vmatpush1.msra.mxu0 0.0
        %418 = vmatprep.subr.mxu0 0.0
        %419 = vmatpush1.msra.mxu0 0.0
        %420 = vmatprep.subr.mxu0 0.0
        %421 = vmatpush1.msra.mxu0 0.0
        %422 = vmatprep.subr.mxu0 0.0
        %423 = vmatpush1.msra.mxu0 0.0
        %424 = vmatprep.subr.mxu0 0.0
        %425 = vmatpush1.msra.mxu0 0.0
        %426 = vmatprep.subr.mxu0 0.0
        %427 = vmatpush1.msra.mxu0 0.0
        %428 = vmatprep.subr.mxu0 0.0
        %429 = vmatpush1.msra.mxu0 0.0
        %430 = vmatprep.subr.mxu0 0.0
        %431 = vmatpush1.msra.mxu0 0.0
        %432 = vmatprep.subr.mxu0 0.0
        %433 = vmatpush1.msra.mxu0 0.0
        %434 = vmatprep.subr.mxu0 0.0
        %435 = vmatpush1.msra.mxu0 0.0
        %436 = vmatprep.subr.mxu0 0.0
        %437 = vmatpush1.msra.mxu0 0.0
        %438 = vmatprep.subr.mxu0 0.0
        %439 = vmatpush1.msra.mxu0 0.0
        %440 = vmatprep.subr.mxu0 0.0
        %441 = vmatpush1.msra.mxu0 0.0
        %442 = vmatprep.subr.mxu0 0.0
        %443 = vmatpush1.msra.mxu0 0.0
        %444 = vmatprep.subr.mxu0 0.0
        %445 = vmatpush1.msra.mxu0 0.0
        %446 = vmatprep.subr.mxu0 0.0
        %447 = vmatpush1.msra.mxu0 0.0
        %448 = vmatprep.subr.mxu0 0.0
        %449 = vmatpush1.msra.mxu0 0.0
        %450 = vmatprep.subr.mxu0 0.0
        %451 = vmatpush1.msra.mxu0 0.0
        %452 = vmatprep.subr.mxu0 0.0
        %453 = vmatpush1.msra.mxu0 0.0
        %454 = vmatprep.subr.mxu0 0.0
        %455 = vmatpush1.msra.mxu0 0.0
        %456 = vmatprep.subr.mxu0 0.0
        %457 = vmatpush1.msra.mxu0 0.0
        %458 = vmatprep.mubr.f32.mxu0 0.0
        %459 = vmatmul.mubr.f32.gmra.mrb[0].mxu0 %v392
        %v460 = vpop.f32.mrb[0].mxu0
        %v461 = vadd.f32 %v389, %v460
        %v462 = vpop.f32.mrb[0].mxu0
        %463 = vdwg.mxu0
        %v464 = vsel %vm390, %v461, 0.0
        %465 = vadd.xlane.f32.xlu0 %v464
        %v466 = vpop.xlane.xlu0 %465
        %v467 = vrcp.pop 32.0
        %v468 = vmul.f32 %v466, %v467
        %v469 = vsub.f32 %v461, %v468
        %v470 = vmul.f32 %v469, %v469
        %v471 = vsel %vm390, %v470, 0.0
        %472 = vadd.xlane.f32.xlu0 %v471
        %v473 = vpop.xlane.xlu0 %472
        %v474 = vmul.f32 %v473, %v467
        %v475 = vadd.f32 %v474, 1e-05
        %v476 = vrsqrt.pop %v475
        %v477 = vmul.f32 %v469, %v476
        %v478 = vlaneseq
        %v479 = vshrl.u32 %v478, 7
        %v480 = vsub.s32 0, %v479
        %v481 = vrot.slane %v377, %v480
        %v482 = vmul.f32 %v477, %v481
        %v483 = vlaneseq
        %v484 = vshrl.u32 %v483, 7
        %v485 = vsub.s32 0, %v484
        %v486 = vrot.slane %v378, %v485
        %v487 = vadd.f32 %v482, %v486
        %v488 = vmul.f32 %v487, 0.5
        %v489 = vmul.f32 %v487, 0.70710677
        %v490 = verf.f32.pop %v489
        %v491 = vadd.f32 %v490, 1.0
        %v492 = vmul.f32 %v488, %v491
        %s493 = scalar_lea.vmem [#allocation7], 32
        %v494 = vld [vmem:[%s493] sm:$0xff]
        %v495 = vld [vmem:[%s493 + $0x8] sm:$0xff]
        %v496 = vld [vmem:[%s493 + $0x10] sm:$0xff]
        %v497 = vld [vmem:[%s493 + $0x18] sm:$0xff]
        %498 = vmatprep.subr.mxu0 0.0
        %499 = vmatpush1.msra.mxu0 %v494
        %500 = vmatprep.subr.mxu0 0.0
        %501 = vmatpush1.msra.mxu0 %v495
        %502 = vmatprep.subr.mxu0 0.0
        %503 = vmatpush1.msra.mxu0 %v496
        %504 = vmatprep.subr.mxu0 0.0
        %505 = vmatpush1.msra.mxu0 %v497
        %506 = vmatprep.subr.mxu0 0.0
        %507 = vmatpush1.msra.mxu0 0.0
        %508 = vmatprep.subr.mxu0 0.0
        %509 = vmatpush1.msra.mxu0 0.0
        %510 = vmatprep.subr.mxu0 0.0
        %511 = vmatpush1.msra.mxu0 0.0
        %512 = vmatprep.subr.mxu0 0.0
        %513 = vmatpush1.msra.mxu0 0.0
        %514 = vmatprep.subr.mxu0 0.0
        %515 = vmatpush1.msra.mxu0 0.0
        %516 = vmatprep.subr.mxu0 0.0
        %517 = vmatpush1.msra.mxu0 0.0
        %518 = vmatprep.subr.mxu0 0.0
        %519 = vmatpush1.msra.mxu0 0.0
        %520 = vmatprep.subr.mxu0 0.0
        %521 = vmatpush1.msra.mxu0 0.0
        %522 = vmatprep.subr.mxu0 0.0
        %523 = vmatpush1.msra.mxu0 0.0
        %524 = vmatprep.subr.mxu0 0.0
        %525 = vmatpush1.msra.mxu0 0.0
        %526 = vmatprep.subr.mxu0 0.0
        %527 = vmatpush1.msra.mxu0 0.0
        %528 = vmatprep.subr.mxu0 0.0
        %529 = vmatpush1.msra.mxu0 0.0
        %530 = vmatprep.subr.mxu0 0.0
        %531 = vmatpush1.msra.mxu0 0.0
        %532 = vmatprep.subr.mxu0 0.0
        %533 = vmatpush1.msra.mxu0 0.0
        %534 = vmatprep.subr.mxu0 0.0
        %535 = vmatpush1.msra.mxu0 0.0
        %536 = vmatprep.subr.mxu0 0.0
        %537 = vmatpush1.msra.mxu0 0.0
        %538 = vmatprep.subr.mxu0 0.0
        %539 = vmatpush1.msra.mxu0 0.0
        %540 = vmatprep.subr.mxu0 0.0
        %541 = vmatpush1.msra.mxu0 0.0
        %542 = vmatprep.subr.mxu0 0.0
        %543 = vmatpush1.msra.mxu0 0.0
        %544 = vmatprep.subr.mxu0 0.0
        %545 = vmatpush1.msra.mxu0 0.0
        %546 = vmatprep.subr.mxu0 0.0
        %547 = vmatpush1.msra.mxu0 0.0
        %548 = vmatprep.subr.mxu0 0.0
        %549 = vmatpush1.msra.mxu0 0.0
        %550 = vmatprep.subr.mxu0 0.0
        %551 = vmatpush1.msra.mxu0 0.0
        %552 = vmatprep.subr.mxu0 0.0
        %553 = vmatpush1.msra.mxu0 0.0
        %554 = vmatprep.subr.mxu0 0.0
        %555 = vmatpush1.msra.mxu0 0.0
        %556 = vmatprep.subr.mxu0 0.0
        %557 = vmatpush1.msra.mxu0 0.0
        %558 = vmatprep.subr.mxu0 0.0
        %559 = vmatpush1.msra.mxu0 0.0
        %560 = vmatprep.subr.mxu0 0.0
        %561 = vmatpush1.msra.mxu0 0.0
        %562 = vmatprep.mubr.f32.mxu0 0.0
        %563 = vmatmul.mubr.f32.gmra.mrb[0].mxu0 %v392
        %v564 = vpop.f32.mrb[0].mxu0
        %v565 = vadd.f32 %v389, %v564
        %v566 = vpop.f32.mrb[0].mxu0
        %567 = vdwg.mxu0
        %v568 = vsel %vm390, %v565, 0.0
        %569 = vadd.xlane.f32.xlu0 %v568
        %v570 = vpop.xlane.xlu0 %569
        %v571 = vmul.f32 %v570, %v467
        %v572 = vsub.f32 %v565, %v571
        %v573 = vmul.f32 %v572, %v572
        %v574 = vsel %vm390, %v573, 0.0
        %575 = vadd.xlane.f32.xlu0 %v574
        %v576 = vpop.xlane.xlu0 %575
        %v577 = vmul.f32 %v576, %v467
        %v578 = vadd.f32 %v577, 1e-05
        %v579 = vrsqrt.pop %v578
        %v580 = vmul.f32 %v572, %v579
        %v581 = vmul.f32 %v580, %v481
        %v582 = vadd.f32 %v581, %v486
        %v583 = vmul.f32 %v582, 0.5
        %v584 = vmul.f32 %v582, 0.70710677
        %v585 = verf.f32.pop %v584
        %v586 = vadd.f32 %v585, 1.0
        %v587 = vmul.f32 %v583, %v586
        %s588 = scalar_lea.vmem [#allocation7], 64
        %v589 = vld [vmem:[%s588] sm:$0xff]
        %v590 = vld [vmem:[%s588 + $0x8] sm:$0xff]
        %v591 = vld [vmem:[%s588 + $0x10] sm:$0xff]
        %v592 = vld [vmem:[%s588 + $0x18] sm:$0xff]
        %593 = vmatprep.subr.mxu0 0.0
        %594 = vmatpush1.msra.mxu0 %v589
        %595 = vmatprep.subr.mxu0 0.0
        %596 = vmatpush1.msra.mxu0 %v590
        %597 = vmatprep.subr.mxu0 0.0
        %598 = vmatpush1.msra.mxu0 %v591
        %599 = vmatprep.subr.mxu0 0.0
        %600 = vmatpush1.msra.mxu0 %v592
        %601 = vmatprep.subr.mxu0 0.0
        %602 = vmatpush1.msra.mxu0 0.0
        %603 = vmatprep.subr.mxu0 0.0
        %604 = vmatpush1.msra.mxu0 0.0
        %605 = vmatprep.subr.mxu0 0.0
        %606 = vmatpush1.msra.mxu0 0.0
        %607 = vmatprep.subr.mxu0 0.0
        %608 = vmatpush1.msra.mxu0 0.0
        %609 = vmatprep.subr.mxu0 0.0
        %610 = vmatpush1.msra.mxu0 0.0
        %611 = vmatprep.subr.mxu0 0.0
        %612 = vmatpush1.msra.mxu0 0.0
        %613 = vmatprep.subr.mxu0 0.0
        %614 = vmatpush1.msra.mxu0 0.0
        %615 = vmatprep.subr.mxu0 0.0
        %616 = vmatpush1.msra.mxu0 0.0
        %617 = vmatprep.subr.mxu0 0.0
        %618 = vmatpush1.msra.mxu0 0.0
        %619 = vmatprep.subr.mxu0 0.0
        %620 = vmatpush1.msra.mxu0 0.0
        %621 = vmatprep.subr.mxu0 0.0
        %622 = vmatpush1.msra.mxu0 0.0
        %623 = vmatprep.subr.mxu0 0.0
        %624 = vmatpush1.msra.mxu0 0.0
        %625 = vmatprep.subr.mxu0 0.0
        %626 = vmatpush1.msra.mxu0 0.0
        %627 = vmatprep.subr.mxu0 0.0
        %628 = vmatpush1.msra.mxu0 0.0
        %629 = vmatprep.subr.mxu0 0.0
        %630 = vmatpush1.msra.mxu0 0.0
        %631 = vmatprep.subr.mxu0 0.0
        %632 = vmatpush1.msra.mxu0 0.0
        %633 = vmatprep.subr.mxu0 0.0
        %634 = vmatpush1.msra.mxu0 0.0
        %635 = vmatprep.subr.mxu0 0.0
        %636 = vmatpush1.msra.mxu0 0.0
        %637 = vmatprep.subr.mxu0 0.0
        %638 = vmatpush1.msra.mxu0 0.0
        %639 = vmatprep.subr.mxu0 0.0
        %640 = vmatpush1.msra.mxu0 0.0
        %641 = vmatprep.subr.mxu0 0.0
        %642 = vmatpush1.msra.mxu0 0.0
        %643 = vmatprep.subr.mxu0 0.0
        %644 = vmatpush1.msra.mxu0 0.0
        %645 = vmatprep.subr.mxu0 0.0
        %646 = vmatpush1.msra.mxu0 0.0
        %647 = vmatprep.subr.mxu0 0.0
        %648 = vmatpush1.msra.mxu0 0.0
        %649 = vmatprep.subr.mxu0 0.0
        %650 = vmatpush1.msra.mxu0 0.0
        %651 = vmatprep.subr.mxu0 0.0
        %652 = vmatpush1.msra.mxu0 0.0
        %653 = vmatprep.subr.mxu0 0.0
        %654 = vmatpush1.msra.mxu0 0.0
        %655 = vmatprep.subr.mxu0 0.0
        %656 = vmatpush1.msra.mxu0 0.0
        %657 = vmatprep.mubr.f32.mxu0 0.0
        %658 = vmatmul.mubr.f32.gmra.mrb[0].mxu0 %v392
        %v659 = vpop.f32.mrb[0].mxu0
        %v660 = vadd.f32 %v389, %v659
        %v661 = vpop.f32.mrb[0].mxu0
        %662 = vdwg.mxu0
        %v663 = vsel %vm390, %v660, 0.0
        %664 = vadd.xlane.f32.xlu0 %v663
        %v665 = vpop.xlane.xlu0 %664
        %v666 = vmul.f32 %v665, %v467
        %v667 = vsub.f32 %v660, %v666
        %v668 = vmul.f32 %v667, %v667
        %v669 = vsel %vm390, %v668, 0.0
        %670 = vadd.xlane.f32.xlu0 %v669
        %v671 = vpop.xlane.xlu0 %670
        %v672 = vmul.f32 %v671, %v467
        %v673 = vadd.f32 %v672, 1e-05
        %v674 = vrsqrt.pop %v673
        %v675 = vmul.f32 %v667, %v674
        %v676 = vmul.f32 %v675, %v481
        %v677 = vadd.f32 %v676, %v486
        %v678 = vmul.f32 %v677, 0.5
        %v679 = vmul.f32 %v677, 0.70710677
        %v680 = verf.f32.pop %v679
        %v681 = vadd.f32 %v680, 1.0
        %v682 = vmul.f32 %v678, %v681
        %s683 = scalar_lea.vmem [#allocation7], 96
        %v684 = vld [vmem:[%s683] sm:$0xff]
        %v685 = vld [vmem:[%s683 + $0x8] sm:$0xff]
        %v686 = vld [vmem:[%s683 + $0x10] sm:$0xff]
        %v687 = vld [vmem:[%s683 + $0x18] sm:$0xff]
        %s688 = scalar_lea.vmem [#allocation7], 128
        %v689 = vld [vmem:[%s688] sm:$0xff]
        %v690 = vld [vmem:[%s688 + $0x8] sm:$0xff]
        %v691 = vld [vmem:[%s688 + $0x10] sm:$0xff]
        %v692 = vld [vmem:[%s688 + $0x18] sm:$0xff]
        %v694 = vsel %vm390, %v375, 0
        %696 = vmatprep.subr.mxu0 0.0
        %697 = vmatpush1.msra.mxu0 %v689
        %698 = vmatprep.subr.mxu0 0.0
        %699 = vmatpush1.msra.mxu0 %v690
        %700 = vmatprep.subr.mxu0 0.0
        %701 = vmatpush1.msra.mxu0 %v691
        %702 = vmatprep.subr.mxu0 0.0
        %703 = vmatpush1.msra.mxu0 %v692
        %704 = vmatprep.subr.mxu0 0.0
        %705 = vmatpush1.msra.mxu0 0.0
        %706 = vmatprep.subr.mxu0 0.0
        %707 = vmatpush1.msra.mxu0 0.0
        %708 = vmatprep.subr.mxu0 0.0
        %709 = vmatpush1.msra.mxu0 0.0
        %710 = vmatprep.subr.mxu0 0.0
        %711 = vmatpush1.msra.mxu0 0.0
        %712 = vmatprep.subr.mxu0 0.0
        %713 = vmatpush1.msra.mxu0 0.0
        %714 = vmatprep.subr.mxu0 0.0
        %715 = vmatpush1.msra.mxu0 0.0
        %716 = vmatprep.subr.mxu0 0.0
        %717 = vmatpush1.msra.mxu0 0.0
        %718 = vmatprep.subr.mxu0 0.0
        %719 = vmatpush1.msra.mxu0 0.0
        %720 = vmatprep.subr.mxu0 0.0
        %721 = vmatpush1.msra.mxu0 0.0
        %722 = vmatprep.subr.mxu0 0.0
        %723 = vmatpush1.msra.mxu0 0.0
        %724 = vmatprep.subr.mxu0 0.0
        %725 = vmatpush1.msra.mxu0 0.0
        %726 = vmatprep.subr.mxu0 0.0
        %727 = vmatpush1.msra.mxu0 0.0
        %728 = vmatprep.subr.mxu0 0.0
        %729 = vmatpush1.msra.mxu0 0.0
        %730 = vmatprep.subr.mxu0 0.0
        %731 = vmatpush1.msra.mxu0 0.0
        %732 = vmatprep.subr.mxu0 0.0
        %733 = vmatpush1.msra.mxu0 0.0
        %734 = vmatprep.subr.mxu0 0.0
        %735 = vmatpush1.msra.mxu0 0.0
        %736 = vmatprep.subr.mxu0 0.0
        %737 = vmatpush1.msra.mxu0 0.0
        %738 = vmatprep.subr.mxu0 0.0
        %739 = vmatpush1.msra.mxu0 0.0
        %740 = vmatprep.subr.mxu0 0.0
        %741 = vmatpush1.msra.mxu0 0.0
        %742 = vmatprep.subr.mxu0 0.0
        %743 = vmatpush1.msra.mxu0 0.0
        %744 = vmatprep.subr.mxu0 0.0
        %745 = vmatpush1.msra.mxu0 0.0
        %746 = vmatprep.subr.mxu0 0.0
        %747 = vmatpush1.msra.mxu0 0.0
        %748 = vmatprep.subr.mxu0 0.0
        %749 = vmatpush1.msra.mxu0 0.0
        %750 = vmatprep.subr.mxu0 0.0
        %751 = vmatpush1.msra.mxu0 0.0
        %752 = vmatprep.subr.mxu0 0.0
        %753 = vmatpush1.msra.mxu0 0.0
        %754 = vmatprep.subr.mxu0 0.0
        %755 = vmatpush1.msra.mxu0 0.0
        %756 = vmatprep.subr.mxu0 0.0
        %757 = vmatpush1.msra.mxu0 0.0
        %758 = vmatprep.subr.mxu0 0.0
        %759 = vmatpush1.msra.mxu0 0.0
        %760 = vmatprep.mubr.f32.mxu0 0.0
        %761 = vmatmul.mubr.f32.gmra.mrb[0].mxu0 %v694
        %v762 = vpop.f32.mrb[0].mxu0
        %v763 = vadd.f32 0.0, %v762
        %v764 = vpop.f32.mrb[0].mxu0
        %765 = vdwg.mxu0
        %766 = vmatprep.subr.mxu0 0.0
        %767 = vmatpush1.msra.mxu0 %v684
        %768 = vmatprep.subr.mxu0 0.0
        %769 = vmatpush1.msra.mxu0 %v685
        %770 = vmatprep.subr.mxu0 0.0
        %771 = vmatpush1.msra.mxu0 %v686
        %772 = vmatprep.subr.mxu0 0.0
        %773 = vmatpush1.msra.mxu0 %v687
        %774 = vmatprep.subr.mxu0 0.0
        %775 = vmatpush1.msra.mxu0 0.0
        %776 = vmatprep.subr.mxu0 0.0
        %777 = vmatpush1.msra.mxu0 0.0
        %778 = vmatprep.subr.mxu0 0.0
        %779 = vmatpush1.msra.mxu0 0.0
        %780 = vmatprep.subr.mxu0 0.0
        %781 = vmatpush1.msra.mxu0 0.0
        %782 = vmatprep.subr.mxu0 0.0
        %783 = vmatpush1.msra.mxu0 0.0
        %784 = vmatprep.subr.mxu0 0.0
        %785 = vmatpush1.msra.mxu0 0.0
        %786 = vmatprep.subr.mxu0 0.0
        %787 = vmatpush1.msra.mxu0 0.0
        %788 = vmatprep.subr.mxu0 0.0
        %789 = vmatpush1.msra.mxu0 0.0
        %790 = vmatprep.subr.mxu0 0.0
        %791 = vmatpush1.msra.mxu0 0.0
        %792 = vmatprep.subr.mxu0 0.0
        %793 = vmatpush1.msra.mxu0 0.0
        %794 = vmatprep.subr.mxu0 0.0
        %795 = vmatpush1.msra.mxu0 0.0
        %796 = vmatprep.subr.mxu0 0.0
        %797 = vmatpush1.msra.mxu0 0.0
        %798 = vmatprep.subr.mxu0 0.0
        %799 = vmatpush1.msra.mxu0 0.0
        %800 = vmatprep.subr.mxu0 0.0
        %801 = vmatpush1.msra.mxu0 0.0
        %802 = vmatprep.subr.mxu0 0.0
        %803 = vmatpush1.msra.mxu0 0.0
        %804 = vmatprep.subr.mxu0 0.0
        %805 = vmatpush1.msra.mxu0 0.0
        %806 = vmatprep.subr.mxu0 0.0
        %807 = vmatpush1.msra.mxu0 0.0
        %808 = vmatprep.subr.mxu0 0.0
        %809 = vmatpush1.msra.mxu0 0.0
        %810 = vmatprep.subr.mxu0 0.0
        %811 = vmatpush1.msra.mxu0 0.0
        %812 = vmatprep.subr.mxu0 0.0
        %813 = vmatpush1.msra.mxu0 0.0
        %814 = vmatprep.subr.mxu0 0.0
        %815 = vmatpush1.msra.mxu0 0.0
        %816 = vmatprep.subr.mxu0 0.0
        %817 = vmatpush1.msra.mxu0 0.0
        %818 = vmatprep.subr.mxu0 0.0
        %819 = vmatpush1.msra.mxu0 0.0
        %820 = vmatprep.subr.mxu0 0.0
        %821 = vmatpush1.msra.mxu0 0.0
        %822 = vmatprep.subr.mxu0 0.0
        %823 = vmatpush1.msra.mxu0 0.0
        %824 = vmatprep.subr.mxu0 0.0
        %825 = vmatpush1.msra.mxu0 0.0
        %826 = vmatprep.subr.mxu0 0.0
        %827 = vmatpush1.msra.mxu0 0.0
        %828 = vmatprep.subr.mxu0 0.0
        %829 = vmatpush1.msra.mxu0 0.0
        %830 = vmatprep.mubr.f32.mxu0 0.0
        %831 = vmatmul.mubr.f32.gmra.mrb[0].mxu0 %v392
        %v832 = vpop.f32.mrb[0].mxu0
        %v833 = vadd.f32 %v763, %v832
        %v834 = vpop.f32.mrb[0].mxu0
        %835 = vdwg.mxu0
        %v836 = vadd.f32 %v833, %v389
        %v837 = vsel %vm390, %v836, 0.0
        %838 = vadd.xlane.f32.xlu0 %v837
        %v839 = vpop.xlane.xlu0 %838
        %v840 = vmul.f32 %v839, %v467
        %v841 = vsub.f32 %v836, %v840
        %v842 = vmul.f32 %v841, %v841
        %v843 = vsel %vm390, %v842, 0.0
        %844 = vadd.xlane.f32.xlu0 %v843
        %v845 = vpop.xlane.xlu0 %844
        %v846 = vmul.f32 %v845, %v467
        %v847 = vadd.f32 %v846, 1e-05
        %v848 = vrsqrt.pop %v847
        %v849 = vmul.f32 %v841, %v848
        %v850 = vmul.f32 %v849, %v481
        %v851 = vadd.f32 %v850, %v486
        %v852 = vmul.f32 %v851, 0.5
        %v853 = vmul.f32 %v851, 0.70710677
        %v854 = verf.f32.pop %v853
        %v855 = vadd.f32 %v854, 1.0
        %v856 = vmul.f32 %v852, %v855
        %857 = vmatprep.subr.mxu0 0.0
        %858 = vmatpush1.msra.mxu0 %v382
        %859 = vmatprep.subr.mxu0 0.0
        %860 = vmatpush1.msra.mxu0 %v383
        %861 = vmatprep.subr.mxu0 0.0
        %862 = vmatpush1.msra.mxu0 %v384
        %863 = vmatprep.subr.mxu0 0.0
        %864 = vmatpush1.msra.mxu0 %v385
        %865 = vmatprep.subr.mxu0 0.0
        %866 = vmatpush1.msra.mxu0 0.0
        %867 = vmatprep.subr.mxu0 0.0
        %868 = vmatpush1.msra.mxu0 0.0
        %869 = vmatprep.subr.mxu0 0.0
        %870 = vmatpush1.msra.mxu0 0.0
        %871 = vmatprep.subr.mxu0 0.0
        %872 = vmatpush1.msra.mxu0 0.0
        %873 = vmatprep.subr.mxu0 0.0
        %874 = vmatpush1.msra.mxu0 0.0
        %875 = vmatprep.subr.mxu0 0.0
        %876 = vmatpush1.msra.mxu0 0.0
        %877 = vmatprep.subr.mxu0 0.0
        %878 = vmatpush1.msra.mxu0 0.0
        %879 = vmatprep.subr.mxu0 0.0
        %880 = vmatpush1.msra.mxu0 0.0
        %881 = vmatprep.subr.mxu0 0.0
        %882 = vmatpush1.msra.mxu0 0.0
        %883 = vmatprep.subr.mxu0 0.0
        %884 = vmatpush1.msra.mxu0 0.0
        %885 = vmatprep.subr.mxu0 0.0
        %886 = vmatpush1.msra.mxu0 0.0
        %887 = vmatprep.subr.mxu0 0.0
        %888 = vmatpush1.msra.mxu0 0.0
        %889 = vmatprep.subr.mxu0 0.0
        %890 = vmatpush1.msra.mxu0 0.0
        %891 = vmatprep.subr.mxu0 0.0
        %892 = vmatpush1.msra.mxu0 0.0
        %893 = vmatprep.subr.mxu0 0.0
        %894 = vmatpush1.msra.mxu0 0.0
        %895 = vmatprep.subr.mxu0 0.0
        %896 = vmatpush1.msra.mxu0 0.0
        %897 = vmatprep.subr.mxu0 0.0
        %898 = vmatpush1.msra.mxu0 0.0
        %899 = vmatprep.subr.mxu0 0.0
        %900 = vmatpush1.msra.mxu0 0.0
        %901 = vmatprep.subr.mxu0 0.0
        %902 = vmatpush1.msra.mxu0 0.0
        %903 = vmatprep.subr.mxu0 0.0
        %904 = vmatpush1.msra.mxu0 0.0
        %905 = vmatprep.subr.mxu0 0.0
        %906 = vmatpush1.msra.mxu0 0.0
        %907 = vmatprep.subr.mxu0 0.0
        %908 = vmatpush1.msra.mxu0 0.0
        %909 = vmatprep.subr.mxu0 0.0
        %910 = vmatpush1.msra.mxu0 0.0
        %911 = vmatprep.subr.mxu0 0.0
        %912 = vmatpush1.msra.mxu0 0.0
        %913 = vmatprep.subr.mxu0 0.0
        %914 = vmatpush1.msra.mxu0 0.0
        %915 = vmatprep.subr.mxu0 0.0
        %916 = vmatpush1.msra.mxu0 0.0
        %917 = vmatprep.subr.mxu0 0.0
        %918 = vmatpush1.msra.mxu0 0.0
        %919 = vmatprep.subr.mxu0 0.0
        %920 = vmatpush1.msra.mxu0 0.0
        %921 = vmatprep.mubr.f32.mxu0 0.0
        %922 = vmatmul.mubr.f32.gmra.mrb[0].mxu0 %v694
        %v923 = vpop.f32.mrb[0].mxu0
        %v924 = vadd.f32 %v389, %v923
        %v925 = vpop.f32.mrb[0].mxu0
        %926 = vdwg.mxu0
        %v927 = vsel %vm390, %v924, 0.0
        %928 = vadd.xlane.f32.xlu0 %v927
        %v929 = vpop.xlane.xlu0 %928
        %v930 = vmul.f32 %v929, %v467
        %v931 = vsub.f32 %v924, %v930
        %v932 = vmul.f32 %v931, %v931
        %v933 = vsel %vm390, %v932, 0.0
        %934 = vadd.xlane.f32.xlu0 %v933
        %v935 = vpop.xlane.xlu0 %934
        %v936 = vmul.f32 %v935, %v467
        %v937 = vadd.f32 %v936, 1e-05
        %v938 = vrsqrt.pop %v937
        %v939 = vmul.f32 %v931, %v938
        %v940 = vmul.f32 %v939, %v481
        %v941 = vadd.f32 %v940, %v486
        %v942 = vmul.f32 %v941, 0.5
        %v943 = vmul.f32 %v941, 0.70710677
        %v944 = verf.f32.pop %v943
        %v945 = vadd.f32 %v944, 1.0
        %v946 = vmul.f32 %v942, %v945
        %v947 = vld [vmem:[#allocation8] sm:$0xff]
        %v948 = vld [vmem:[#allocation8 + $0x8] sm:$0xff]
        %v949 = vld [vmem:[#allocation8 + $0x10] sm:$0xff]
        %v950 = vld [vmem:[#allocation8 + $0x18] sm:$0xff]
        %s951 = scalar_lea.vmem [#allocation8], 32
        %v952 = vld [vmem:[%s951] sm:$0xff]
        %v953 = vld [vmem:[%s951 + $0x8] sm:$0xff]
        %v954 = vld [vmem:[%s951 + $0x10] sm:$0xff]
        %v955 = vld [vmem:[%s951 + $0x18] sm:$0xff]
        %s956 = scalar_lea.vmem [#allocation8], 64
        %v957 = vld [vmem:[%s956] sm:$0xff]
        %v958 = vld [vmem:[%s956 + $0x8] sm:$0xff]
        %v959 = vld [vmem:[%s956 + $0x10] sm:$0xff]
        %v960 = vld [vmem:[%s956 + $0x18] sm:$0xff]
        %v962 = vsel %vm390, %v587, 0
        %964 = vmatprep.subr.mxu0 0.0
        %965 = vmatpush1.msra.mxu0 %v952
        %966 = vmatprep.subr.mxu0 0.0
        %967 = vmatpush1.msra.mxu0 %v953
        %968 = vmatprep.subr.mxu0 0.0
        %969 = vmatpush1.msra.mxu0 %v954
        %970 = vmatprep.subr.mxu0 0.0
        %971 = vmatpush1.msra.mxu0 %v955
        %972 = vmatprep.subr.mxu0 0.0
        %973 = vmatpush1.msra.mxu0 0.0
        %974 = vmatprep.subr.mxu0 0.0
        %975 = vmatpush1.msra.mxu0 0.0
        %976 = vmatprep.subr.mxu0 0.0
        %977 = vmatpush1.msra.mxu0 0.0
        %978 = vmatprep.subr.mxu0 0.0
        %979 = vmatpush1.msra.mxu0 0.0
        %980 = vmatprep.subr.mxu0 0.0
        %981 = vmatpush1.msra.mxu0 0.0
        %982 = vmatprep.subr.mxu0 0.0
        %983 = vmatpush1.msra.mxu0 0.0
        %984 = vmatprep.subr.mxu0 0.0
        %985 = vmatpush1.msra.mxu0 0.0
        %986 = vmatprep.subr.mxu0 0.0
        %987 = vmatpush1.msra.mxu0 0.0
        %988 = vmatprep.subr.mxu0 0.0
        %989 = vmatpush1.msra.mxu0 0.0
        %990 = vmatprep.subr.mxu0 0.0
        %991 = vmatpush1.msra.mxu0 0.0
        %992 = vmatprep.subr.mxu0 0.0
        %993 = vmatpush1.msra.mxu0 0.0
        %994 = vmatprep.subr.mxu0 0.0
        %995 = vmatpush1.msra.mxu0 0.0
        %996 = vmatprep.subr.mxu0 0.0
        %997 = vmatpush1.msra.mxu0 0.0
        %998 = vmatprep.subr.mxu0 0.0
        %999 = vmatpush1.msra.mxu0 0.0
        %1000 = vmatprep.subr.mxu0 0.0
        %1001 = vmatpush1.msra.mxu0 0.0
        %1002 = vmatprep.subr.mxu0 0.0
        %1003 = vmatpush1.msra.mxu0 0.0
        %1004 = vmatprep.subr.mxu0 0.0
        %1005 = vmatpush1.msra.mxu0 0.0
        %1006 = vmatprep.subr.mxu0 0.0
        %1007 = vmatpush1.msra.mxu0 0.0
        %1008 = vmatprep.subr.mxu0 0.0
        %1009 = vmatpush1.msra.mxu0 0.0
        %1010 = vmatprep.subr.mxu0 0.0
        %1011 = vmatpush1.msra.mxu0 0.0
        %1012 = vmatprep.subr.mxu0 0.0
        %1013 = vmatpush1.msra.mxu0 0.0
        %1014 = vmatprep.subr.mxu0 0.0
        %1015 = vmatpush1.msra.mxu0 0.0
        %1016 = vmatprep.subr.mxu0 0.0
        %1017 = vmatpush1.msra.mxu0 0.0
        %1018 = vmatprep.subr.mxu0 0.0
        %1019 = vmatpush1.msra.mxu0 0.0
        %1020 = vmatprep.subr.mxu0 0.0
        %1021 = vmatpush1.msra.mxu0 0.0
        %1022 = vmatprep.subr.mxu0 0.0
        %1023 = vmatpush1.msra.mxu0 0.0
        %1024 = vmatprep.subr.mxu0 0.0
        %1025 = vmatpush1.msra.mxu0 0.0
        %1026 = vmatprep.subr.mxu0 0.0
        %1027 = vmatpush1.msra.mxu0 0.0
        %1028 = vmatprep.mubr.f32.mxu0 0.0
        %1029 = vmatmul.mubr.f32.gmra.mrb[0].mxu0 %v962
        %v1030 = vpop.f32.mrb[0].mxu0
        %v1031 = vadd.f32 0.0, %v1030
        %v1032 = vpop.f32.mrb[0].mxu0
        %1033 = vdwg.mxu0
        %v1035 = vsel %vm390, %v492, 0
        %1037 = vmatprep.subr.mxu0 0.0
        %1038 = vmatpush1.msra.mxu0 %v947
        %1039 = vmatprep.subr.mxu0 0.0
        %1040 = vmatpush1.msra.mxu0 %v948
        %1041 = vmatprep.subr.mxu0 0.0
        %1042 = vmatpush1.msra.mxu0 %v949
        %1043 = vmatprep.subr.mxu0 0.0
        %1044 = vmatpush1.msra.mxu0 %v950
        %1045 = vmatprep.subr.mxu0 0.0
        %1046 = vmatpush1.msra.mxu0 0.0
        %1047 = vmatprep.subr.mxu0 0.0
        %1048 = vmatpush1.msra.mxu0 0.0
        %1049 = vmatprep.subr.mxu0 0.0
        %1050 = vmatpush1.msra.mxu0 0.0
        %1051 = vmatprep.subr.mxu0 0.0
        %1052 = vmatpush1.msra.mxu0 0.0
        %1053 = vmatprep.subr.mxu0 0.0
        %1054 = vmatpush1.msra.mxu0 0.0
        %1055 = vmatprep.subr.mxu0 0.0
        %1056 = vmatpush1.msra.mxu0 0.0
        %1057 = vmatprep.subr.mxu0 0.0
        %1058 = vmatpush1.msra.mxu0 0.0
        %1059 = vmatprep.subr.mxu0 0.0
        %1060 = vmatpush1.msra.mxu0 0.0
        %1061 = vmatprep.subr.mxu0 0.0
        %1062 = vmatpush1.msra.mxu0 0.0
        %1063 = vmatprep.subr.mxu0 0.0
        %1064 = vmatpush1.msra.mxu0 0.0
        %1065 = vmatprep.subr.mxu0 0.0
        %1066 = vmatpush1.msra.mxu0 0.0
        %1067 = vmatprep.subr.mxu0 0.0
        %1068 = vmatpush1.msra.mxu0 0.0
        %1069 = vmatprep.subr.mxu0 0.0
        %1070 = vmatpush1.msra.mxu0 0.0
        %1071 = vmatprep.subr.mxu0 0.0
        %1072 = vmatpush1.msra.mxu0 0.0
        %1073 = vmatprep.subr.mxu0 0.0
        %1074 = vmatpush1.msra.mxu0 0.0
        %1075 = vmatprep.subr.mxu0 0.0
        %1076 = vmatpush1.msra.mxu0 0.0
        %1077 = vmatprep.subr.mxu0 0.0
        %1078 = vmatpush1.msra.mxu0 0.0
        %1079 = vmatprep.subr.mxu0 0.0
        %1080 = vmatpush1.msra.mxu0 0.0
        %1081 = vmatprep.subr.mxu0 0.0
        %1082 = vmatpush1.msra.mxu0 0.0
        %1083 = vmatprep.subr.mxu0 0.0
        %1084 = vmatpush1.msra.mxu0 0.0
        %1085 = vmatprep.subr.mxu0 0.0
        %1086 = vmatpush1.msra.mxu0 0.0
        %1087 = vmatprep.subr.mxu0 0.0
        %1088 = vmatpush1.msra.mxu0 0.0
        %1089 = vmatprep.subr.mxu0 0.0
        %1090 = vmatpush1.msra.mxu0 0.0
        %1091 = vmatprep.subr.mxu0 0.0
        %1092 = vmatpush1.msra.mxu0 0.0
        %1093 = vmatprep.subr.mxu0 0.0
        %1094 = vmatpush1.msra.mxu0 0.0
        %1095 = vmatprep.subr.mxu0 0.0
        %1096 = vmatpush1.msra.mxu0 0.0
        %1097 = vmatprep.subr.mxu0 0.0
        %1098 = vmatpush1.msra.mxu0 0.0
        %1099 = vmatprep.subr.mxu0 0.0
        %1100 = vmatpush1.msra.mxu0 0.0
        %1101 = vmatprep.mubr.f32.mxu0 0.0
        %1102 = vmatmul.mubr.f32.gmra.mrb[0].mxu0 %v1035
        %v1103 = vpop.f32.mrb[0].mxu0
        %v1104 = vadd.f32 %v1031, %v1103
        %v1105 = vpop.f32.mrb[0].mxu0
        %1106 = vdwg.mxu0
        %v1108 = vsel %vm390, %v682, 0
        %1110 = vmatprep.subr.mxu0 0.0
        %1111 = vmatpush1.msra.mxu0 %v957
        %1112 = vmatprep.subr.mxu0 0.0
        %1113 = vmatpush1.msra.mxu0 %v958
        %1114 = vmatprep.subr.mxu0 0.0
        %1115 = vmatpush1.msra.mxu0 %v959
        %1116 = vmatprep.subr.mxu0 0.0
        %1117 = vmatpush1.msra.mxu0 %v960
        %1118 = vmatprep.subr.mxu0 0.0
        %1119 = vmatpush1.msra.mxu0 0.0
        %1120 = vmatprep.subr.mxu0 0.0
        %1121 = vmatpush1.msra.mxu0 0.0
        %1122 = vmatprep.subr.mxu0 0.0
        %1123 = vmatpush1.msra.mxu0 0.0
        %1124 = vmatprep.subr.mxu0 0.0
        %1125 = vmatpush1.msra.mxu0 0.0
        %1126 = vmatprep.subr.mxu0 0.0
        %1127 = vmatpush1.msra.mxu0 0.0
        %1128 = vmatprep.subr.mxu0 0.0
        %1129 = vmatpush1.msra.mxu0 0.0
        %1130 = vmatprep.subr.mxu0 0.0
        %1131 = vmatpush1.msra.mxu0 0.0
        %1132 = vmatprep.subr.mxu0 0.0
        %1133 = vmatpush1.msra.mxu0 0.0
        %1134 = vmatprep.subr.mxu0 0.0
        %1135 = vmatpush1.msra.mxu0 0.0
        %1136 = vmatprep.subr.mxu0 0.0
        %1137 = vmatpush1.msra.mxu0 0.0
        %1138 = vmatprep.subr.mxu0 0.0
        %1139 = vmatpush1.msra.mxu0 0.0
        %1140 = vmatprep.subr.mxu0 0.0
        %1141 = vmatpush1.msra.mxu0 0.0
        %1142 = vmatprep.subr.mxu0 0.0
        %1143 = vmatpush1.msra.mxu0 0.0
        %1144 = vmatprep.subr.mxu0 0.0
        %1145 = vmatpush1.msra.mxu0 0.0
        %1146 = vmatprep.subr.mxu0 0.0
        %1147 = vmatpush1.msra.mxu0 0.0
        %1148 = vmatprep.subr.mxu0 0.0
        %1149 = vmatpush1.msra.mxu0 0.0
        %1150 = vmatprep.subr.mxu0 0.0
        %1151 = vmatpush1.msra.mxu0 0.0
        %1152 = vmatprep.subr.mxu0 0.0
        %1153 = vmatpush1.msra.mxu0 0.0
        %1154 = vmatprep.subr.mxu0 0.0
        %1155 = vmatpush1.msra.mxu0 0.0
        %1156 = vmatprep.subr.mxu0 0.0
        %1157 = vmatpush1.msra.mxu0 0.0
        %1158 = vmatprep.subr.mxu0 0.0
        %1159 = vmatpush1.msra.mxu0 0.0
        %1160 = vmatprep.subr.mxu0 0.0
        %1161 = vmatpush1.msra.mxu0 0.0
        %1162 = vmatprep.subr.mxu0 0.0
        %1163 = vmatpush1.msra.mxu0 0.0
        %1164 = vmatprep.subr.mxu0 0.0
        %1165 = vmatpush1.msra.mxu0 0.0
        %1166 = vmatprep.subr.mxu0 0.0
        %1167 = vmatpush1.msra.mxu0 0.0
        %1168 = vmatprep.subr.mxu0 0.0
        %1169 = vmatpush1.msra.mxu0 0.0
        %1170 = vmatprep.subr.mxu0 0.0
        %1171 = vmatpush1.msra.mxu0 0.0
        %1172 = vmatprep.subr.mxu0 0.0
        %1173 = vmatpush1.msra.mxu0 0.0
        %1174 = vmatprep.mubr.f32.mxu0 0.0
        %1175 = vmatmul.mubr.f32.gmra.mrb[0].mxu0 %v1108
        %v1176 = vpop.f32.mrb[0].mxu0
        %v1177 = vadd.f32 0.0, %v1176
        %v1178 = vpop.f32.mrb[0].mxu0
        %1179 = vdwg.mxu0
        %v1180 = vadd.f32 %v1104, %v1177
        %v1181 = vlaneseq
        %v1182 = vshrl.u32 %v1181, 7
        %v1183 = vsub.s32 0, %v1182
        %v1184 = vrot.slane %v379, %v1183
        %v1185 = vadd.f32 %v1180, %v1184
        %v1186 = vsel %vm390, %v1185, 0.0
        %1187 = vadd.xlane.f32.xlu0 %v1186
        %v1188 = vpop.xlane.xlu0 %1187
        %v1189 = vmul.f32 %v1188, %v467
        %v1190 = vsub.f32 %v1185, %v1189
        %v1191 = vmul.f32 %v1190, %v1190
        %v1192 = vsel %vm390, %v1191, 0.0
        %1193 = vadd.xlane.f32.xlu0 %v1192
        %v1194 = vpop.xlane.xlu0 %1193
        %v1195 = vmul.f32 %v1194, %v467
        %v1196 = vadd.f32 %v1195, 1e-05
        %v1197 = vrsqrt.pop %v1196
        %v1198 = vmul.f32 %v1190, %v1197
        %v1199 = vlaneseq
        %v1200 = vshrl.u32 %v1199, 7
        %v1201 = vsub.s32 0, %v1200
        %v1202 = vrot.slane %v380, %v1201
        %v1203 = vmul.f32 %v1198, %v1202
        %v1204 = vlaneseq
        %v1205 = vshrl.u32 %v1204, 7
        %v1206 = vsub.s32 0, %v1205
        %v1207 = vrot.slane %v381, %v1206
        %v1208 = vadd.f32 %v1203, %v1207
        %v1209 = vmul.f32 %v1208, 0.5
        %v1210 = vmul.f32 %v1208, 0.70710677
        %v1211 = verf.f32.pop %v1210
        %v1212 = vadd.f32 %v1211, 1.0
        %v1213 = vmul.f32 %v1209, %v1212
        %v1215 = vsel %vm390, %v856, 0
        %1217 = vmatprep.subr.mxu0 0.0
        %1218 = vmatpush1.msra.mxu0 %v952
        %1219 = vmatprep.subr.mxu0 0.0
        %1220 = vmatpush1.msra.mxu0 %v953
        %1221 = vmatprep.subr.mxu0 0.0
        %1222 = vmatpush1.msra.mxu0 %v954
        %1223 = vmatprep.subr.mxu0 0.0
        %1224 = vmatpush1.msra.mxu0 %v955
        %1225 = vmatprep.subr.mxu0 0.0
        %1226 = vmatpush1.msra.mxu0 0.0
        %1227 = vmatprep.subr.mxu0 0.0
        %1228 = vmatpush1.msra.mxu0 0.0
        %1229 = vmatprep.subr.mxu0 0.0
        %1230 = vmatpush1.msra.mxu0 0.0
        %1231 = vmatprep.subr.mxu0 0.0
        %1232 = vmatpush1.msra.mxu0 0.0
        %1233 = vmatprep.subr.mxu0 0.0
        %1234 = vmatpush1.msra.mxu0 0.0
        %1235 = vmatprep.subr.mxu0 0.0
        %1236 = vmatpush1.msra.mxu0 0.0
        %1237 = vmatprep.subr.mxu0 0.0
        %1238 = vmatpush1.msra.mxu0 0.0
        %1239 = vmatprep.subr.mxu0 0.0
        %1240 = vmatpush1.msra.mxu0 0.0
        %1241 = vmatprep.subr.mxu0 0.0
        %1242 = vmatpush1.msra.mxu0 0.0
        %1243 = vmatprep.subr.mxu0 0.0
        %1244 = vmatpush1.msra.mxu0 0.0
        %1245 = vmatprep.subr.mxu0 0.0
        %1246 = vmatpush1.msra.mxu0 0.0
        %1247 = vmatprep.subr.mxu0 0.0
        %1248 = vmatpush1.msra.mxu0 0.0
        %1249 = vmatprep.subr.mxu0 0.0
        %1250 = vmatpush1.msra.mxu0 0.0
        %1251 = vmatprep.subr.mxu0 0.0
        %1252 = vmatpush1.msra.mxu0 0.0
        %1253 = vmatprep.subr.mxu0 0.0
        %1254 = vmatpush1.msra.mxu0 0.0
        %1255 = vmatprep.subr.mxu0 0.0
        %1256 = vmatpush1.msra.mxu0 0.0
        %1257 = vmatprep.subr.mxu0 0.0
        %1258 = vmatpush1.msra.mxu0 0.0
        %1259 = vmatprep.subr.mxu0 0.0
        %1260 = vmatpush1.msra.mxu0 0.0
        %1261 = vmatprep.subr.mxu0 0.0
        %1262 = vmatpush1.msra.mxu0 0.0
        %1263 = vmatprep.subr.mxu0 0.0
        %1264 = vmatpush1.msra.mxu0 0.0
        %1265 = vmatprep.subr.mxu0 0.0
        %1266 = vmatpush1.msra.mxu0 0.0
        %1267 = vmatprep.subr.mxu0 0.0
        %1268 = vmatpush1.msra.mxu0 0.0
        %1269 = vmatprep.subr.mxu0 0.0
        %1270 = vmatpush1.msra.mxu0 0.0
        %1271 = vmatprep.subr.mxu0 0.0
        %1272 = vmatpush1.msra.mxu0 0.0
        %1273 = vmatprep.subr.mxu0 0.0
        %1274 = vmatpush1.msra.mxu0 0.0
        %1275 = vmatprep.subr.mxu0 0.0
        %1276 = vmatpush1.msra.mxu0 0.0
        %1277 = vmatprep.subr.mxu0 0.0
        %1278 = vmatpush1.msra.mxu0 0.0
        %1279 = vmatprep.subr.mxu0 0.0
        %1280 = vmatpush1.msra.mxu0 0.0
        %1281 = vmatprep.mubr.f32.mxu0 0.0
        %1282 = vmatmul.mubr.f32.gmra.mrb[0].mxu0 %v1215
        %v1283 = vpop.f32.mrb[0].mxu0
        %v1284 = vadd.f32 0.0, %v1283
        %v1285 = vpop.f32.mrb[0].mxu0
        %1286 = vdwg.mxu0
        %1287 = vmatprep.subr.mxu0 0.0
        %1288 = vmatpush1.msra.mxu0 %v947
        %1289 = vmatprep.subr.mxu0 0.0
        %1290 = vmatpush1.msra.mxu0 %v948
        %1291 = vmatprep.subr.mxu0 0.0
        %1292 = vmatpush1.msra.mxu0 %v949
        %1293 = vmatprep.subr.mxu0 0.0
        %1294 = vmatpush1.msra.mxu0 %v950
        %1295 = vmatprep.subr.mxu0 0.0
        %1296 = vmatpush1.msra.mxu0 0.0
        %1297 = vmatprep.subr.mxu0 0.0
        %1298 = vmatpush1.msra.mxu0 0.0
        %1299 = vmatprep.subr.mxu0 0.0
        %1300 = vmatpush1.msra.mxu0 0.0
        %1301 = vmatprep.subr.mxu0 0.0
        %1302 = vmatpush1.msra.mxu0 0.0
        %1303 = vmatprep.subr.mxu0 0.0
        %1304 = vmatpush1.msra.mxu0 0.0
        %1305 = vmatprep.subr.mxu0 0.0
        %1306 = vmatpush1.msra.mxu0 0.0
        %1307 = vmatprep.subr.mxu0 0.0
        %1308 = vmatpush1.msra.mxu0 0.0
        %1309 = vmatprep.subr.mxu0 0.0
        %1310 = vmatpush1.msra.mxu0 0.0
        %1311 = vmatprep.subr.mxu0 0.0
        %1312 = vmatpush1.msra.mxu0 0.0
        %1313 = vmatprep.subr.mxu0 0.0
        %1314 = vmatpush1.msra.mxu0 0.0
        %1315 = vmatprep.subr.mxu0 0.0
        %1316 = vmatpush1.msra.mxu0 0.0
        %1317 = vmatprep.subr.mxu0 0.0
        %1318 = vmatpush1.msra.mxu0 0.0
        %1319 = vmatprep.subr.mxu0 0.0
        %1320 = vmatpush1.msra.mxu0 0.0
        %1321 = vmatprep.subr.mxu0 0.0
        %1322 = vmatpush1.msra.mxu0 0.0
        %1323 = vmatprep.subr.mxu0 0.0
        %1324 = vmatpush1.msra.mxu0 0.0
        %1325 = vmatprep.subr.mxu0 0.0
        %1326 = vmatpush1.msra.mxu0 0.0
        %1327 = vmatprep.subr.mxu0 0.0
        %1328 = vmatpush1.msra.mxu0 0.0
        %1329 = vmatprep.subr.mxu0 0.0
        %1330 = vmatpush1.msra.mxu0 0.0
        %1331 = vmatprep.subr.mxu0 0.0
        %1332 = vmatpush1.msra.mxu0 0.0
        %1333 = vmatprep.subr.mxu0 0.0
        %1334 = vmatpush1.msra.mxu0 0.0
        %1335 = vmatprep.subr.mxu0 0.0
        %1336 = vmatpush1.msra.mxu0 0.0
        %1337 = vmatprep.subr.mxu0 0.0
        %1338 = vmatpush1.msra.mxu0 0.0
        %1339 = vmatprep.subr.mxu0 0.0
        %1340 = vmatpush1.msra.mxu0 0.0
        %1341 = vmatprep.subr.mxu0 0.0
        %1342 = vmatpush1.msra.mxu0 0.0
        %1343 = vmatprep.subr.mxu0 0.0
        %1344 = vmatpush1.msra.mxu0 0.0
        %1345 = vmatprep.subr.mxu0 0.0
        %1346 = vmatpush1.msra.mxu0 0.0
        %1347 = vmatprep.subr.mxu0 0.0
        %1348 = vmatpush1.msra.mxu0 0.0
        %1349 = vmatprep.subr.mxu0 0.0
        %1350 = vmatpush1.msra.mxu0 0.0
        %1351 = vmatprep.mubr.f32.mxu0 0.0
        %1352 = vmatmul.mubr.f32.gmra.mrb[0].mxu0 %v1108
        %v1353 = vpop.f32.mrb[0].mxu0
        %v1354 = vadd.f32 %v1284, %v1353
        %v1355 = vpop.f32.mrb[0].mxu0
        %1356 = vdwg.mxu0
        %v1358 = vsel %vm390, %v946, 0
        %1360 = vmatprep.subr.mxu0 0.0
        %1361 = vmatpush1.msra.mxu0 %v957
        %1362 = vmatprep.subr.mxu0 0.0
        %1363 = vmatpush1.msra.mxu0 %v958
        %1364 = vmatprep.subr.mxu0 0.0
        %1365 = vmatpush1.msra.mxu0 %v959
        %1366 = vmatprep.subr.mxu0 0.0
        %1367 = vmatpush1.msra.mxu0 %v960
        %1368 = vmatprep.subr.mxu0 0.0
        %1369 = vmatpush1.msra.mxu0 0.0
        %1370 = vmatprep.subr.mxu0 0.0
        %1371 = vmatpush1.msra.mxu0 0.0
        %1372 = vmatprep.subr.mxu0 0.0
        %1373 = vmatpush1.msra.mxu0 0.0
        %1374 = vmatprep.subr.mxu0 0.0
        %1375 = vmatpush1.msra.mxu0 0.0
        %1376 = vmatprep.subr.mxu0 0.0
        %1377 = vmatpush1.msra.mxu0 0.0
        %1378 = vmatprep.subr.mxu0 0.0
        %1379 = vmatpush1.msra.mxu0 0.0
        %1380 = vmatprep.subr.mxu0 0.0
        %1381 = vmatpush1.msra.mxu0 0.0
        %1382 = vmatprep.subr.mxu0 0.0
        %1383 = vmatpush1.msra.mxu0 0.0
        %1384 = vmatprep.subr.mxu0 0.0
        %1385 = vmatpush1.msra.mxu0 0.0
        %1386 = vmatprep.subr.mxu0 0.0
        %1387 = vmatpush1.msra.mxu0 0.0
        %1388 = vmatprep.subr.mxu0 0.0
        %1389 = vmatpush1.msra.mxu0 0.0
        %1390 = vmatprep.subr.mxu0 0.0
        %1391 = vmatpush1.msra.mxu0 0.0
        %1392 = vmatprep.subr.mxu0 0.0
        %1393 = vmatpush1.msra.mxu0 0.0
        %1394 = vmatprep.subr.mxu0 0.0
        %1395 = vmatpush1.msra.mxu0 0.0
        %1396 = vmatprep.subr.mxu0 0.0
        %1397 = vmatpush1.msra.mxu0 0.0
        %1398 = vmatprep.subr.mxu0 0.0
        %1399 = vmatpush1.msra.mxu0 0.0
        %1400 = vmatprep.subr.mxu0 0.0
        %1401 = vmatpush1.msra.mxu0 0.0
        %1402 = vmatprep.subr.mxu0 0.0
        %1403 = vmatpush1.msra.mxu0 0.0
        %1404 = vmatprep.subr.mxu0 0.0
        %1405 = vmatpush1.msra.mxu0 0.0
        %1406 = vmatprep.subr.mxu0 0.0
        %1407 = vmatpush1.msra.mxu0 0.0
        %1408 = vmatprep.subr.mxu0 0.0
        %1409 = vmatpush1.msra.mxu0 0.0
        %1410 = vmatprep.subr.mxu0 0.0
        %1411 = vmatpush1.msra.mxu0 0.0
        %1412 = vmatprep.subr.mxu0 0.0
        %1413 = vmatpush1.msra.mxu0 0.0
        %1414 = vmatprep.subr.mxu0 0.0
        %1415 = vmatpush1.msra.mxu0 0.0
        %1416 = vmatprep.subr.mxu0 0.0
        %1417 = vmatpush1.msra.mxu0 0.0
        %1418 = vmatprep.subr.mxu0 0.0
        %1419 = vmatpush1.msra.mxu0 0.0
        %1420 = vmatprep.subr.mxu0 0.0
        %1421 = vmatpush1.msra.mxu0 0.0
        %1422 = vmatprep.subr.mxu0 0.0
        %1423 = vmatpush1.msra.mxu0 0.0
        %1424 = vmatprep.mubr.f32.mxu0 0.0
        %1425 = vmatmul.mubr.f32.gmra.mrb[0].mxu0 %v1358
        %v1426 = vpop.f32.mrb[0].mxu0
        %v1427 = vadd.f32 0.0, %v1426
        %v1428 = vpop.f32.mrb[0].mxu0
        %1429 = vdwg.mxu0
        %v1430 = vadd.f32 %v1354, %v1427
        %v1431 = vadd.f32 %v1430, %v1184
        %v1432 = vsel %vm390, %v1431, 0.0
        %1433 = vadd.xlane.f32.xlu0 %v1432
        %v1434 = vpop.xlane.xlu0 %1433
        %v1435 = vmul.f32 %v1434, %v467
        %v1436 = vsub.f32 %v1431, %v1435
        %v1437 = vmul.f32 %v1436, %v1436
        %v1438 = vsel %vm390, %v1437, 0.0
        %1439 = vadd.xlane.f32.xlu0 %v1438
        %v1440 = vpop.xlane.xlu0 %1439
        %v1441 = vmul.f32 %v1440, %v467
        %v1442 = vadd.f32 %v1441, 1e-05
        %v1443 = vrsqrt.pop %v1442
        %v1444 = vmul.f32 %v1436, %v1443
        %v1445 = vmul.f32 %v1444, %v1202
        %v1446 = vadd.f32 %v1445, %v1207
        %v1447 = vmul.f32 %v1446, 0.5
        %v1448 = vmul.f32 %v1446, 0.70710677
        %v1449 = verf.f32.pop %v1448
        %v1450 = vadd.f32 %v1449, 1.0
        %v1451 = vmul.f32 %v1447, %v1450
        %v1452 = vsel %vm390, %v1213, 0.0
        %1453 = vadd.xlane.f32.xlu0 %v1452
        %v1454 = vpop.xlane.xlu0 %1453
        %v1455 = vmul.f32 %v1454, %v467
        %v1456 = vsub.f32 %v1213, %v1455
        %v1457 = vmul.f32 %v1456, %v1456
        %v1458 = vsel %vm390, %v1457, 0.0
        %1459 = vadd.xlane.f32.xlu0 %v1458
        %v1460 = vpop.xlane.xlu0 %1459
        %v1461 = vmul.f32 %v1460, %v467
        %v1462 = vadd.f32 %v1461, 1e-05
        %v1463 = vrsqrt.pop %v1462
        %v1464 = vmul.f32 %v1456, %v1463
        %v1465 = vld [vmem:[#allocation10] sm:$0xff]
        %v1466 = vld [vmem:[#allocation10 + $0x8] sm:$0xff]
        %v1467 = vld [vmem:[#allocation10 + $0x10] sm:$0xff]
        %v1468 = vld [vmem:[#allocation10 + $0x18] sm:$0xff]
        %v1469 = vsel %vm390, %v1451, 0.0
        %1470 = vadd.xlane.f32.xlu0 %v1469
        %v1471 = vpop.xlane.xlu0 %1470
        %v1472 = vmul.f32 %v1471, %v467
        %v1473 = vsub.f32 %v1451, %v1472
        %v1474 = vmul.f32 %v1473, %v1473
        %v1475 = vsel %vm390, %v1474, 0.0
        %1476 = vadd.xlane.f32.xlu0 %v1475
        %v1477 = vpop.xlane.xlu0 %1476
        %v1478 = vmul.f32 %v1477, %v467
        %v1479 = vadd.f32 %v1478, 1e-05
        %v1480 = vrsqrt.pop %v1479
        %v1481 = vmul.f32 %v1473, %v1480
        %s1482 = scalar_lea.vmem [#allocation10], 32
        %v1483 = vld [vmem:[%s1482] sm:$0xff]
        %v1484 = vld [vmem:[%s1482 + $0x8] sm:$0xff]
        %v1485 = vld [vmem:[%s1482 + $0x10] sm:$0xff]
        %v1486 = vld [vmem:[%s1482 + $0x18] sm:$0xff]
        %v1488 = vsel %vm390, %v1481, 0
        %1490 = vmatprep.subr.mxu0 0.0
        %1491 = vmatpush1.msra.mxu0 %v1483
        %1492 = vmatprep.subr.mxu0 0.0
        %1493 = vmatpush1.msra.mxu0 %v1484
        %1494 = vmatprep.subr.mxu0 0.0
        %1495 = vmatpush1.msra.mxu0 %v1485
        %1496 = vmatprep.subr.mxu0 0.0
        %1497 = vmatpush1.msra.mxu0 %v1486
        %1498 = vmatprep.subr.mxu0 0.0
        %1499 = vmatpush1.msra.mxu0 0.0
        %1500 = vmatprep.subr.mxu0 0.0
        %1501 = vmatpush1.msra.mxu0 0.0
        %1502 = vmatprep.subr.mxu0 0.0
        %1503 = vmatpush1.msra.mxu0 0.0
        %1504 = vmatprep.subr.mxu0 0.0
        %1505 = vmatpush1.msra.mxu0 0.0
        %1506 = vmatprep.subr.mxu0 0.0
        %1507 = vmatpush1.msra.mxu0 0.0
        %1508 = vmatprep.subr.mxu0 0.0
        %1509 = vmatpush1.msra.mxu0 0.0
        %1510 = vmatprep.subr.mxu0 0.0
        %1511 = vmatpush1.msra.mxu0 0.0
        %1512 = vmatprep.subr.mxu0 0.0
        %1513 = vmatpush1.msra.mxu0 0.0
        %1514 = vmatprep.subr.mxu0 0.0
        %1515 = vmatpush1.msra.mxu0 0.0
        %1516 = vmatprep.subr.mxu0 0.0
        %1517 = vmatpush1.msra.mxu0 0.0
        %1518 = vmatprep.subr.mxu0 0.0
        %1519 = vmatpush1.msra.mxu0 0.0
        %1520 = vmatprep.subr.mxu0 0.0
        %1521 = vmatpush1.msra.mxu0 0.0
        %1522 = vmatprep.subr.mxu0 0.0
        %1523 = vmatpush1.msra.mxu0 0.0
        %1524 = vmatprep.subr.mxu0 0.0
        %1525 = vmatpush1.msra.mxu0 0.0
        %1526 = vmatprep.subr.mxu0 0.0
        %1527 = vmatpush1.msra.mxu0 0.0
        %1528 = vmatprep.subr.mxu0 0.0
        %1529 = vmatpush1.msra.mxu0 0.0
        %1530 = vmatprep.subr.mxu0 0.0
        %1531 = vmatpush1.msra.mxu0 0.0
        %1532 = vmatprep.subr.mxu0 0.0
        %1533 = vmatpush1.msra.mxu0 0.0
        %1534 = vmatprep.subr.mxu0 0.0
        %1535 = vmatpush1.msra.mxu0 0.0
        %1536 = vmatprep.subr.mxu0 0.0
        %1537 = vmatpush1.msra.mxu0 0.0
        %1538 = vmatprep.subr.mxu0 0.0
        %1539 = vmatpush1.msra.mxu0 0.0
        %1540 = vmatprep.subr.mxu0 0.0
        %1541 = vmatpush1.msra.mxu0 0.0
        %1542 = vmatprep.subr.mxu0 0.0
        %1543 = vmatpush1.msra.mxu0 0.0
        %1544 = vmatprep.subr.mxu0 0.0
        %1545 = vmatpush1.msra.mxu0 0.0
        %1546 = vmatprep.subr.mxu0 0.0
        %1547 = vmatpush1.msra.mxu0 0.0
        %1548 = vmatprep.subr.mxu0 0.0
        %1549 = vmatpush1.msra.mxu0 0.0
        %1550 = vmatprep.subr.mxu0 0.0
        %1551 = vmatpush1.msra.mxu0 0.0
        %1552 = vmatprep.subr.mxu0 0.0
        %1553 = vmatpush1.msra.mxu0 0.0
        %1554 = vmatprep.mubr.f32.mxu0 0.0
        %1555 = vmatmul.mubr.f32.gmra.mrb[0].mxu0 %v1488
        %v1556 = vpop.f32.mrb[0].mxu0
        %v1557 = vadd.f32 0.0, %v1556
        %v1558 = vpop.f32.mrb[0].mxu0
        %1559 = vdwg.mxu0
        %v1561 = vsel %vm390, %v1464, 0
        %1563 = vmatprep.subr.mxu0 0.0
        %1564 = vmatpush1.msra.mxu0 %v1465
        %1565 = vmatprep.subr.mxu0 0.0
        %1566 = vmatpush1.msra.mxu0 %v1466
        %1567 = vmatprep.subr.mxu0 0.0
        %1568 = vmatpush1.msra.mxu0 %v1467
        %1569 = vmatprep.subr.mxu0 0.0
        %1570 = vmatpush1.msra.mxu0 %v1468
        %1571 = vmatprep.subr.mxu0 0.0
        %1572 = vmatpush1.msra.mxu0 0.0
        %1573 = vmatprep.subr.mxu0 0.0
        %1574 = vmatpush1.msra.mxu0 0.0
        %1575 = vmatprep.subr.mxu0 0.0
        %1576 = vmatpush1.msra.mxu0 0.0
        %1577 = vmatprep.subr.mxu0 0.0
        %1578 = vmatpush1.msra.mxu0 0.0
        %1579 = vmatprep.subr.mxu0 0.0
        %1580 = vmatpush1.msra.mxu0 0.0
        %1581 = vmatprep.subr.mxu0 0.0
        %1582 = vmatpush1.msra.mxu0 0.0
        %1583 = vmatprep.subr.mxu0 0.0
        %1584 = vmatpush1.msra.mxu0 0.0
        %1585 = vmatprep.subr.mxu0 0.0
        %1586 = vmatpush1.msra.mxu0 0.0
        %1587 = vmatprep.subr.mxu0 0.0
        %1588 = vmatpush1.msra.mxu0 0.0
        %1589 = vmatprep.subr.mxu0 0.0
        %1590 = vmatpush1.msra.mxu0 0.0
        %1591 = vmatprep.subr.mxu0 0.0
        %1592 = vmatpush1.msra.mxu0 0.0
        %1593 = vmatprep.subr.mxu0 0.0
        %1594 = vmatpush1.msra.mxu0 0.0
        %1595 = vmatprep.subr.mxu0 0.0
        %1596 = vmatpush1.msra.mxu0 0.0
        %1597 = vmatprep.subr.mxu0 0.0
        %1598 = vmatpush1.msra.mxu0 0.0
        %1599 = vmatprep.subr.mxu0 0.0
        %1600 = vmatpush1.msra.mxu0 0.0
        %1601 = vmatprep.subr.mxu0 0.0
        %1602 = vmatpush1.msra.mxu0 0.0
        %1603 = vmatprep.subr.mxu0 0.0
        %1604 = vmatpush1.msra.mxu0 0.0
        %1605 = vmatprep.subr.mxu0 0.0
        %1606 = vmatpush1.msra.mxu0 0.0
        %1607 = vmatprep.subr.mxu0 0.0
        %1608 = vmatpush1.msra.mxu0 0.0
        %1609 = vmatprep.subr.mxu0 0.0
        %1610 = vmatpush1.msra.mxu0 0.0
        %1611 = vmatprep.subr.mxu0 0.0
        %1612 = vmatpush1.msra.mxu0 0.0
        %1613 = vmatprep.subr.mxu0 0.0
        %1614 = vmatpush1.msra.mxu0 0.0
        %1615 = vmatprep.subr.mxu0 0.0
        %1616 = vmatpush1.msra.mxu0 0.0
        %1617 = vmatprep.subr.mxu0 0.0
        %1618 = vmatpush1.msra.mxu0 0.0
        %1619 = vmatprep.subr.mxu0 0.0
        %1620 = vmatpush1.msra.mxu0 0.0
        %1621 = vmatprep.subr.mxu0 0.0
        %1622 = vmatpush1.msra.mxu0 0.0
        %1623 = vmatprep.subr.mxu0 0.0
        %1624 = vmatpush1.msra.mxu0 0.0
        %1625 = vmatprep.subr.mxu0 0.0
        %1626 = vmatpush1.msra.mxu0 0.0
        %1627 = vmatprep.mubr.f32.mxu0 0.0
        %1628 = vmatmul.mubr.f32.gmra.mrb[0].mxu0 %v1561
        %v1629 = vpop.f32.mrb[0].mxu0
        %v1630 = vadd.f32 %v1557, %v1629
        %v1631 = vpop.f32.mrb[0].mxu0
        %1632 = vdwg.mxu0
        %v1633 = vld [vmem:[%s6] sm:$0x1]
        %v1635 = vlaneseq
        %v1636 = vshrl.u32 %v1635, 7
        %v1637 = vsub.s32 0, %v1636
        %v1638 = vrot.slane %v1633, %v1637
        %v1640 = vadd.f32 %v1630, %v1638
        %1641 = vst [vmem:[%s373] sm:$0xff] %v1640
        %s1642 = sand.u32 %s193, 1
        %s1643 = scalar_lea.sflag [#allocation4], %s1642
        %s1644 = sand.u32 %s193, 1
        %s1645 = smul.addr %s1644, 8
        %s1646 = scalar_lea.vmem [#allocation11], %s1645
        // Predicated region
        $region69: #{tpu_custom_call.1} parent=47 // pred_check
          %p1647 = pneg %p203
        $region70: #{tpu_custom_call.1} parent=47 // pred_check_branch
          %1649 = sbr.rel (%p1647) target = $region72
        $region71: #{tpu_custom_call.1} parent=47 // pred_region
          %s1651 = ssub.s32 128, 128
          %1652 = vsyncadd %s1643, %s1651
          %s1653 = smul.addr %s28, 128
          %s1654 = scalar_lea.hbm %s7, %s1653
          %s1656 = sshll.u32 %s1646, 4
          %s1657 = int_to_ptr.vmem [resolvable:$true] %s1656
          %1659 = dma.vmem_to_hbm [thread:$0]  %s1657, 128, %s1654, %s1643
        $region72: #{tpu_custom_call.1} parent=47 // pred_fallthru
          _
      $region48: #{tpu_custom_call.1} parent=5 // pred_fallthru
        _
      %p1660 = scmp.le.s32.totalorder 2, %s23
      // Predicated region
      $region73: #{tpu_custom_call.1} parent=5 // pred_check
        %p1661 = pneg %p1660
      $region74: #{tpu_custom_call.1} parent=5 // pred_check_branch
        %1663 = sbr.rel (%p1661) target = $region76
      $region75: #{tpu_custom_call.1} parent=5 // pred_region
        %s1664 = ssub.s32 %s23, 2
        // Predicated region
        $region77: #{tpu_custom_call.1} parent=75 // pred_check
          %p1665 = pneg %p209
        $region78: #{tpu_custom_call.1} parent=75 // pred_check_branch
          %1667 = sbr.rel (%p1665) target = $region80
        $region79: #{tpu_custom_call.1} parent=75 // pred_region
          %s1668 = sand.u32 %s194, 1
          %s1669 = scalar_lea.sflag [#allocation4], %s1668
          %s1670 = sand.u32 %s194, 1
          %s1671 = smul.addr %s1670, 8
          %s1672 = scalar_lea.vmem [#allocation11], %s1671
          %1673 = dma.done %s1669, 128
        $region80: #{tpu_custom_call.1} parent=75 // pred_fallthru
          _
      $region76: #{tpu_custom_call.1} parent=5 // pred_fallthru
        _
    $region6: #{tpu_custom_call.1} parent=1 // loop_footer
      %s27 = sadd.s32 1, %s23
    $region7: #{tpu_custom_call.1} parent=1 // loop_footer_branch
      %22 = sbr.rel target = $region3
    $region8: #{tpu_custom_call.1} parent=1 // loop_exit
      _
    %1674 = vsyncpa [#allocation3], 1
    %s1675 = scalar_lea.sflag [#allocation3], 1
    %1676 = vsyncpa %s1675, 1
    %1677 = vsyncpa [#allocation6], 1
    %s1678 = scalar_lea.sflag [#allocation6], 1
    %1679 = vsyncpa %s1678, 1
    %1680 = vsyncpa [#allocation9], 1
    %1681 = vsyncpa [#allocation4], 1
    %s1682 = scalar_lea.sflag [#allocation4], 1
    %1683 = vsyncpa %s1682, 1

</llo_original>
